<compile_context>
chip_gen: v7x
topology: tpu7x:2x2x1
jax: 0.10.0
libtpu: 0.0.40
codegen_flags: <defaults>
</compile_context>

<pallas_src>
import numpy as np
import jax
import jax.numpy as jnp
from jax import lax
from jax.experimental import pallas as pl
from jax.experimental.pallas import tpu as pltpu

INPUT_SIZE = 1
HIDDEN = 50
HIDDEN_PAD = 128          # lane-aligned padded hidden size
OUTPUT_SIZE = 1
SEQ_LEN = 8
GATE_PERM = (0, 1, 3, 2)  # PyTorch gate order [i, f, g, o] -> packed order [i, f, o, g]

HP = HIDDEN_PAD
# Packed "small parameter" slab layout (lane-dense, single DMA):
#   [0      : 4*HP)  W_ih packed       (1, 4*HP)
#   [4*HP   : 8*HP)  gate bias packed  (1, 4*HP)
#   [8*HP   : 9*HP)  linear weight row (1, HP)
#   [9*HP   : 10*HP) linear bias in lane 0, rest zero
SMALL_WIDTH = 10 * HP


def lstm_kernel(x_ref, w_hh_ref, small_ref, out_ref):
    """Full LSTM recurrence + final linear layer in one grid-less kernel.

    x_ref     : (T, 1)        input sequence (time-major, batch=1 squeezed)
    w_hh_ref  : (HP, 4*HP)    packed hidden->gate weights (rows >= HIDDEN zero)
    small_ref : (1, 10*HP)    packed [W_ih | bias | W_linear | b_linear]
    out_ref   : (1, 1)        prediction for the last timestep
    """
    T = x_ref.shape[0]

    # Unpack the lane-dense small-parameter slab.
    w_ih = small_ref[:, 0:4 * HP]                 # (1, 4*HP)
    b    = small_ref[:, 4 * HP:8 * HP]            # (1, 4*HP)
    wl   = small_ref[:, 8 * HP:9 * HP]            # (1, HP)
    bl   = small_ref[:, 9 * HP:9 * HP + 1]        # (1, 1)

    # Input projection + bias hoisted out of the recurrence.
    # INPUT_SIZE == 1, so x @ W_ih is just a lane-broadcast multiply on the VPU.
    pre_x = x_ref[...] * w_ih + b                 # (T, 4*HP), ~4 vregs live

    h = jnp.zeros((1, HP), jnp.float32)
    c = jnp.zeros((1, HP), jnp.float32)

    # T is static -> fully unrolled recurrence (one wide MXU matmul per step).
    for t in range(T):
        # Load W_hh from VMEM inside the step: Mosaic streams RHS tiles to the
        # MXU; avoids a 64-vreg live range spanning all 8 serial steps.
        pre = (
            jnp.dot(h, w_hh_ref[...], preferred_element_type=jnp.float32)
            + pre_x[t:t + 1, :]
        )                                         # (1, 4*HP)

        # EUP ordering: only i, f, g are needed to form c; issue tanh(c) before
        # the o-gate sigmoid so the o-gate overlaps VPU work on c instead of
        # queuing ahead of tanh(g)/tanh(c) in the single EUP FIFO.
        if_g = jax.nn.sigmoid(pre[:, :2 * HP])    # (1, 2*HP)  [i, f]
        g_g = jnp.tanh(pre[:, 3 * HP:])           # (1, HP)    [g]
        i_g = if_g[:, :HP]
        f_g = if_g[:, HP:2 * HP]
        c = f_g * c + i_g * g_g
        tanh_c = jnp.tanh(c)
        o_g = jax.nn.sigmoid(pre[:, 2 * HP:3 * HP])
        h = o_g * tanh_c

    # Final Linear(H -> 1): VPU multiply + lane reduction (no MXU matvec).
    out_ref[...] = jnp.sum(h * wl, axis=-1, keepdims=True) + bl


def pack_params(w_ih, w_hh, b, wl, bl):
    """One-time host-side (numpy) packing of all parameters.

    PyTorch gate order [i, f, g, o] -> packed [i, f, o, g], lane-padded to HP.
    Padded rows/lanes are zero so padded lanes of h/c stay exactly 0.
    """
    w_ih = np.asarray(w_ih, np.float32)   # (4, 1, HIDDEN)
    w_hh = np.asarray(w_hh, np.float32)   # (4, HIDDEN, HIDDEN)
    b = np.asarray(b, np.float32)         # (4, 1, HIDDEN)
    wl = np.asarray(wl, np.float32)       # (HIDDEN, 1)
    bl = np.asarray(bl, np.float32)       # (1, 1)

    w_hh_p = np.zeros((HP, 4 * HP), np.float32)
    small = np.zeros((1, SMALL_WIDTH), np.float32)
    for pos, src in enumerate(GATE_PERM):
        lo = pos * HP
        small[0, lo:lo + HIDDEN] = w_ih[src, 0, :]
        w_hh_p[:HIDDEN, lo:lo + HIDDEN] = w_hh[src]
        small[0, 4 * HP + lo:4 * HP + lo + HIDDEN] = b[src, 0, :]
    small[0, 8 * HP:8 * HP + HIDDEN] = wl[:, 0]
    small[0, 9 * HP] = bl[0, 0]
    return jnp.asarray(w_hh_p), jnp.asarray(small)


@jax.jit
def receipt_lstm_forward(x, w_hh_packed, small_packed):
    vmem = pltpu.MemorySpace.VMEM
    out = pl.pallas_call(
        lstm_kernel,
        out_shape=jax.ShapeDtypeStruct((1, 1), jnp.float32),
        in_specs=[pl.BlockSpec(memory_space=vmem)] * 3,
        out_specs=pl.BlockSpec(memory_space=vmem),
    )(x, w_hh_packed, small_packed)
    # PyTorch forward returns predictions[-1] with shape (output_size,)
    return out.reshape(OUTPUT_SIZE)


def reference_forward(x, w_ih, w_hh, b, wl, bl):
    """Pure-JAX reference (matches PyTorch nn.LSTM + nn.Linear semantics)."""
    def step(carry, x_t):
        h, c = carry
        x_t = x_t[None, :]  # (1, I)
        pre = [x_t @ w_ih[g] + h @ w_hh[g] + b[g] for g in range(4)]
        i_g = jax.nn.sigmoid(pre[0])
        f_g = jax.nn.sigmoid(pre[1])
        g_g = jnp.tanh(pre[2])
        o_g = jax.nn.sigmoid(pre[3])
        c_new = f_g * c + i_g * g_g
        h_new = o_g * jnp.tanh(c_new)
        return (h_new, c_new), h_new

    h0 = jnp.zeros((1, HIDDEN), jnp.float32)
    c0 = jnp.zeros((1, HIDDEN), jnp.float32)
    (h_final, _), _ = lax.scan(step, (h0, c0), x)
    return (h_final @ wl + bl).reshape(OUTPUT_SIZE)


if __name__ == "__main__":
    key = jax.random.PRNGKey(0)
    keys = jax.random.split(key, 7)
    k = 1.0 / np.sqrt(HIDDEN)  # PyTorch default init bound for LSTM and Linear(H, .)

    w_ih = jax.random.uniform(keys[0], (4, INPUT_SIZE, HIDDEN), jnp.float32, -k, k)
    w_hh = jax.random.uniform(keys[1], (4, HIDDEN, HIDDEN), jnp.float32, -k, k)
    b_ih = jax.random.uniform(keys[2], (4, 1, HIDDEN), jnp.float32, -k, k)
    b_hh = jax.random.uniform(keys[3], (4, 1, HIDDEN), jnp.float32, -k, k)
    b = b_ih + b_hh  # combined gate bias
    wl = jax.random.uniform(keys[4], (HIDDEN, OUTPUT_SIZE), jnp.float32, -k, k)
    bl = jax.random.uniform(keys[5], (1, OUTPUT_SIZE), jnp.float32, -k, k)

    x = jax.random.normal(keys[6], (SEQ_LEN, INPUT_SIZE), jnp.float32)

    # Pack once at "model init" (hoisted out of the per-call path).
    w_hh_packed, small_packed = pack_params(w_ih, w_hh, b, wl, bl)

    pred = receipt_lstm_forward(x, w_hh_packed, small_packed)
    jax.block_until_ready(pred)

    ref = reference_forward(x, w_ih, w_hh, b, wl, bl)
    np.testing.assert_allclose(np.asarray(pred), np.asarray(ref), rtol=1e-5, atol=1e-5)

    print("KERNEL_OK")
</pallas_src>

<mosaic_0001>
module attributes {stable_mosaic.version = 11 : i64} {
  func.func @lstm_kernel(%arg0: memref<8x1xf32, #tpu.memory_space<vmem>>, %arg1: memref<128x512xf32, #tpu.memory_space<vmem>>, %arg2: memref<1x1280xf32, #tpu.memory_space<vmem>>, %arg3: memref<1x1xf32, #tpu.memory_space<vmem>>) attributes {dimension_semantics = [], scalar_prefetch = 0 : i64, scratch_operands = 0 : i64, tpu.core_type = #tpu.core_type<tc>} {
    %c0 = arith.constant 0 : index
    %c0_0 = arith.constant 0 : index
    %0 = vector.load %arg2[%c0, %c0_0] : memref<1x1280xf32, #tpu.memory_space<vmem>>, vector<1x512xf32>
    %c0_1 = arith.constant 0 : index
    %c512 = arith.constant 512 : index
    %1 = vector.load %arg2[%c0_1, %c512] : memref<1x1280xf32, #tpu.memory_space<vmem>>, vector<1x512xf32>
    %c0_2 = arith.constant 0 : index
    %c1024 = arith.constant 1024 : index
    %2 = vector.load %arg2[%c0_2, %c1024] : memref<1x1280xf32, #tpu.memory_space<vmem>>, vector<1x128xf32>
    %c0_3 = arith.constant 0 : index
    %c1152 = arith.constant 1152 : index
    %3 = vector.load %arg2[%c0_3, %c1152] : memref<1x1280xf32, #tpu.memory_space<vmem>>, vector<1x1xf32>
    %c0_4 = arith.constant 0 : index
    %c0_5 = arith.constant 0 : index
    %4 = vector.load %arg0[%c0_4, %c0_5] : memref<8x1xf32, #tpu.memory_space<vmem>>, vector<8x1xf32>
    %5 = vector.broadcast %4 : vector<8x1xf32> to vector<8x512xf32>
    %6 = vector.broadcast %0 : vector<1x512xf32> to vector<8x512xf32>
    %7 = arith.mulf %5, %6 : vector<8x512xf32>
    %8 = vector.broadcast %1 : vector<1x512xf32> to vector<8x512xf32>
    %9 = arith.addf %7, %8 : vector<8x512xf32>
    %cst = arith.constant 0.000000e+00 : f32
    %10 = vector.broadcast %cst : f32 to vector<1x128xf32>
    %cst_6 = arith.constant 0.000000e+00 : f32
    %11 = vector.broadcast %cst_6 : f32 to vector<1x128xf32>
    %c0_7 = arith.constant 0 : index
    %c0_8 = arith.constant 0 : index
    %12 = vector.load %arg1[%c0_7, %c0_8] : memref<128x512xf32, #tpu.memory_space<vmem>>, vector<128x512xf32>
    %cst_9 = arith.constant dense<0.000000e+00> : vector<1x512xf32>
    %13 = tpu.matmul %10, %12, %cst_9 {dimension_numbers = #tpu.dot_dimension_numbers<[1], [0], [0], [1], [0, 0, 1, 1], [], []>} : vector<1x128xf32>, vector<128x512xf32>, vector<1x512xf32> -> vector<1x512xf32>
    %14 = vector.extract_strided_slice %9 {offsets = [0, 0], sizes = [1, 512], strides = [1, 1]} : vector<8x512xf32> to vector<1x512xf32>
    %15 = arith.addf %13, %14 : vector<1x512xf32>
    %16 = vector.extract_strided_slice %15 {offsets = [0, 0], sizes = [1, 256], strides = [1, 1]} : vector<1x512xf32> to vector<1x256xf32>
    %17 = arith.negf %16 : vector<1x256xf32>
    %18 = math.exp %17 : vector<1x256xf32>
    %cst_10 = arith.constant 1.000000e+00 : f32
    %19 = vector.broadcast %cst_10 : f32 to vector<1x256xf32>
    %20 = arith.addf %19, %18 : vector<1x256xf32>
    %21 = arith.divf %19, %20 : vector<1x256xf32>
    %22 = vector.extract_strided_slice %15 {offsets = [0, 384], sizes = [1, 128], strides = [1, 1]} : vector<1x512xf32> to vector<1x128xf32>
    %23 = math.tanh %22 : vector<1x128xf32>
    %24 = vector.extract_strided_slice %21 {offsets = [0, 0], sizes = [1, 128], strides = [1, 1]} : vector<1x256xf32> to vector<1x128xf32>
    %25 = vector.extract_strided_slice %21 {offsets = [0, 128], sizes = [1, 128], strides = [1, 1]} : vector<1x256xf32> to vector<1x128xf32>
    %26 = arith.mulf %25, %11 : vector<1x128xf32>
    %27 = arith.mulf %24, %23 : vector<1x128xf32>
    %28 = arith.addf %26, %27 : vector<1x128xf32>
    %29 = math.tanh %28 : vector<1x128xf32>
    %30 = vector.extract_strided_slice %15 {offsets = [0, 256], sizes = [1, 128], strides = [1, 1]} : vector<1x512xf32> to vector<1x128xf32>
    %31 = arith.negf %30 : vector<1x128xf32>
    %32 = math.exp %31 : vector<1x128xf32>
    %cst_11 = arith.constant 1.000000e+00 : f32
    %33 = vector.broadcast %cst_11 : f32 to vector<1x128xf32>
    %34 = arith.addf %33, %32 : vector<1x128xf32>
    %35 = arith.divf %33, %34 : vector<1x128xf32>
    %36 = arith.mulf %35, %29 : vector<1x128xf32>
    %c0_12 = arith.constant 0 : index
    %c0_13 = arith.constant 0 : index
    %37 = vector.load %arg1[%c0_12, %c0_13] : memref<128x512xf32, #tpu.memory_space<vmem>>, vector<128x512xf32>
    %cst_14 = arith.constant dense<0.000000e+00> : vector<1x512xf32>
    %38 = tpu.matmul %36, %37, %cst_14 {dimension_numbers = #tpu.dot_dimension_numbers<[1], [0], [0], [1], [0, 0, 1, 1], [], []>} : vector<1x128xf32>, vector<128x512xf32>, vector<1x512xf32> -> vector<1x512xf32>
    %39 = vector.extract_strided_slice %9 {offsets = [1, 0], sizes = [1, 512], strides = [1, 1]} : vector<8x512xf32> to vector<1x512xf32>
    %40 = arith.addf %38, %39 : vector<1x512xf32>
    %41 = vector.extract_strided_slice %40 {offsets = [0, 0], sizes = [1, 256], strides = [1, 1]} : vector<1x512xf32> to vector<1x256xf32>
    %42 = arith.negf %41 : vector<1x256xf32>
    %43 = math.exp %42 : vector<1x256xf32>
    %cst_15 = arith.constant 1.000000e+00 : f32
    %44 = vector.broadcast %cst_15 : f32 to vector<1x256xf32>
    %45 = arith.addf %44, %43 : vector<1x256xf32>
    %46 = arith.divf %44, %45 : vector<1x256xf32>
    %47 = vector.extract_strided_slice %40 {offsets = [0, 384], sizes = [1, 128], strides = [1, 1]} : vector<1x512xf32> to vector<1x128xf32>
    %48 = math.tanh %47 : vector<1x128xf32>
    %49 = vector.extract_strided_slice %46 {offsets = [0, 0], sizes = [1, 128], strides = [1, 1]} : vector<1x256xf32> to vector<1x128xf32>
    %50 = vector.extract_strided_slice %46 {offsets = [0, 128], sizes = [1, 128], strides = [1, 1]} : vector<1x256xf32> to vector<1x128xf32>
    %51 = arith.mulf %50, %28 : vector<1x128xf32>
    %52 = arith.mulf %49, %48 : vector<1x128xf32>
    %53 = arith.addf %51, %52 : vector<1x128xf32>
    %54 = math.tanh %53 : vector<1x128xf32>
    %55 = vector.extract_strided_slice %40 {offsets = [0, 256], sizes = [1, 128], strides = [1, 1]} : vector<1x512xf32> to vector<1x128xf32>
    %56 = arith.negf %55 : vector<1x128xf32>
    %57 = math.exp %56 : vector<1x128xf32>
    %cst_16 = arith.constant 1.000000e+00 : f32
    %58 = vector.broadcast %cst_16 : f32 to vector<1x128xf32>
    %59 = arith.addf %58, %57 : vector<1x128xf32>
    %60 = arith.divf %58, %59 : vector<1x128xf32>
    %61 = arith.mulf %60, %54 : vector<1x128xf32>
    %c0_17 = arith.constant 0 : index
    %c0_18 = arith.constant 0 : index
    %62 = vector.load %arg1[%c0_17, %c0_18] : memref<128x512xf32, #tpu.memory_space<vmem>>, vector<128x512xf32>
    %cst_19 = arith.constant dense<0.000000e+00> : vector<1x512xf32>
    %63 = tpu.matmul %61, %62, %cst_19 {dimension_numbers = #tpu.dot_dimension_numbers<[1], [0], [0], [1], [0, 0, 1, 1], [], []>} : vector<1x128xf32>, vector<128x512xf32>, vector<1x512xf32> -> vector<1x512xf32>
    %64 = vector.extract_strided_slice %9 {offsets = [2, 0], sizes = [1, 512], strides = [1, 1]} : vector<8x512xf32> to vector<1x512xf32>
    %65 = arith.addf %63, %64 : vector<1x512xf32>
    %66 = vector.extract_strided_slice %65 {offsets = [0, 0], sizes = [1, 256], strides = [1, 1]} : vector<1x512xf32> to vector<1x256xf32>
    %67 = arith.negf %66 : vector<1x256xf32>
    %68 = math.exp %67 : vector<1x256xf32>
    %cst_20 = arith.constant 1.000000e+00 : f32
    %69 = vector.broadcast %cst_20 : f32 to vector<1x256xf32>
    %70 = arith.addf %69, %68 : vector<1x256xf32>
    %71 = arith.divf %69, %70 : vector<1x256xf32>
    %72 = vector.extract_strided_slice %65 {offsets = [0, 384], sizes = [1, 128], strides = [1, 1]} : vector<1x512xf32> to vector<1x128xf32>
    %73 = math.tanh %72 : vector<1x128xf32>
    %74 = vector.extract_strided_slice %71 {offsets = [0, 0], sizes = [1, 128], strides = [1, 1]} : vector<1x256xf32> to vector<1x128xf32>
    %75 = vector.extract_strided_slice %71 {offsets = [0, 128], sizes = [1, 128], strides = [1, 1]} : vector<1x256xf32> to vector<1x128xf32>
    %76 = arith.mulf %75, %53 : vector<1x128xf32>
    %77 = arith.mulf %74, %73 : vector<1x128xf32>
    %78 = arith.addf %76, %77 : vector<1x128xf32>
    %79 = math.tanh %78 : vector<1x128xf32>
    %80 = vector.extract_strided_slice %65 {offsets = [0, 256], sizes = [1, 128], strides = [1, 1]} : vector<1x512xf32> to vector<1x128xf32>
    %81 = arith.negf %80 : vector<1x128xf32>
    %82 = math.exp %81 : vector<1x128xf32>
    %cst_21 = arith.constant 1.000000e+00 : f32
    %83 = vector.broadcast %cst_21 : f32 to vector<1x128xf32>
    %84 = arith.addf %83, %82 : vector<1x128xf32>
    %85 = arith.divf %83, %84 : vector<1x128xf32>
    %86 = arith.mulf %85, %79 : vector<1x128xf32>
    %c0_22 = arith.constant 0 : index
    %c0_23 = arith.constant 0 : index
    %87 = vector.load %arg1[%c0_22, %c0_23] : memref<128x512xf32, #tpu.memory_space<vmem>>, vector<128x512xf32>
    %cst_24 = arith.constant dense<0.000000e+00> : vector<1x512xf32>
    %88 = tpu.matmul %86, %87, %cst_24 {dimension_numbers = #tpu.dot_dimension_numbers<[1], [0], [0], [1], [0, 0, 1, 1], [], []>} : vector<1x128xf32>, vector<128x512xf32>, vector<1x512xf32> -> vector<1x512xf32>
    %89 = vector.extract_strided_slice %9 {offsets = [3, 0], sizes = [1, 512], strides = [1, 1]} : vector<8x512xf32> to vector<1x512xf32>
    %90 = arith.addf %88, %89 : vector<1x512xf32>
    %91 = vector.extract_strided_slice %90 {offsets = [0, 0], sizes = [1, 256], strides = [1, 1]} : vector<1x512xf32> to vector<1x256xf32>
    %92 = arith.negf %91 : vector<1x256xf32>
    %93 = math.exp %92 : vector<1x256xf32>
    %cst_25 = arith.constant 1.000000e+00 : f32
    %94 = vector.broadcast %cst_25 : f32 to vector<1x256xf32>
    %95 = arith.addf %94, %93 : vector<1x256xf32>
    %96 = arith.divf %94, %95 : vector<1x256xf32>
    %97 = vector.extract_strided_slice %90 {offsets = [0, 384], sizes = [1, 128], strides = [1, 1]} : vector<1x512xf32> to vector<1x128xf32>
    %98 = math.tanh %97 : vector<1x128xf32>
    %99 = vector.extract_strided_slice %96 {offsets = [0, 0], sizes = [1, 128], strides = [1, 1]} : vector<1x256xf32> to vector<1x128xf32>
    %100 = vector.extract_strided_slice %96 {offsets = [0, 128], sizes = [1, 128], strides = [1, 1]} : vector<1x256xf32> to vector<1x128xf32>
    %101 = arith.mulf %100, %78 : vector<1x128xf32>
    %102 = arith.mulf %99, %98 : vector<1x128xf32>
    %103 = arith.addf %101, %102 : vector<1x128xf32>
    %104 = math.tanh %103 : vector<1x128xf32>
    %105 = vector.extract_strided_slice %90 {offsets = [0, 256], sizes = [1, 128], strides = [1, 1]} : vector<1x512xf32> to vector<1x128xf32>
    %106 = arith.negf %105 : vector<1x128xf32>
    %107 = math.exp %106 : vector<1x128xf32>
    %cst_26 = arith.constant 1.000000e+00 : f32
    %108 = vector.broadcast %cst_26 : f32 to vector<1x128xf32>
    %109 = arith.addf %108, %107 : vector<1x128xf32>
    %110 = arith.divf %108, %109 : vector<1x128xf32>
    %111 = arith.mulf %110, %104 : vector<1x128xf32>
    %c0_27 = arith.constant 0 : index
    %c0_28 = arith.constant 0 : index
    %112 = vector.load %arg1[%c0_27, %c0_28] : memref<128x512xf32, #tpu.memory_space<vmem>>, vector<128x512xf32>
    %cst_29 = arith.constant dense<0.000000e+00> : vector<1x512xf32>
    %113 = tpu.matmul %111, %112, %cst_29 {dimension_numbers = #tpu.dot_dimension_numbers<[1], [0], [0], [1], [0, 0, 1, 1], [], []>} : vector<1x128xf32>, vector<128x512xf32>, vector<1x512xf32> -> vector<1x512xf32>
    %114 = vector.extract_strided_slice %9 {offsets = [4, 0], sizes = [1, 512], strides = [1, 1]} : vector<8x512xf32> to vector<1x512xf32>
    %115 = arith.addf %113, %114 : vector<1x512xf32>
    %116 = vector.extract_strided_slice %115 {offsets = [0, 0], sizes = [1, 256], strides = [1, 1]} : vector<1x512xf32> to vector<1x256xf32>
    %117 = arith.negf %116 : vector<1x256xf32>
    %118 = math.exp %117 : vector<1x256xf32>
    %cst_30 = arith.constant 1.000000e+00 : f32
    %119 = vector.broadcast %cst_30 : f32 to vector<1x256xf32>
    %120 = arith.addf %119, %118 : vector<1x256xf32>
    %121 = arith.divf %119, %120 : vector<1x256xf32>
    %122 = vector.extract_strided_slice %115 {offsets = [0, 384], sizes = [1, 128], strides = [1, 1]} : vector<1x512xf32> to vector<1x128xf32>
    %123 = math.tanh %122 : vector<1x128xf32>
    %124 = vector.extract_strided_slice %121 {offsets = [0, 0], sizes = [1, 128], strides = [1, 1]} : vector<1x256xf32> to vector<1x128xf32>
    %125 = vector.extract_strided_slice %121 {offsets = [0, 128], sizes = [1, 128], strides = [1, 1]} : vector<1x256xf32> to vector<1x128xf32>
    %126 = arith.mulf %125, %103 : vector<1x128xf32>
    %127 = arith.mulf %124, %123 : vector<1x128xf32>
    %128 = arith.addf %126, %127 : vector<1x128xf32>
    %129 = math.tanh %128 : vector<1x128xf32>
    %130 = vector.extract_strided_slice %115 {offsets = [0, 256], sizes = [1, 128], strides = [1, 1]} : vector<1x512xf32> to vector<1x128xf32>
    %131 = arith.negf %130 : vector<1x128xf32>
    %132 = math.exp %131 : vector<1x128xf32>
    %cst_31 = arith.constant 1.000000e+00 : f32
    %133 = vector.broadcast %cst_31 : f32 to vector<1x128xf32>
    %134 = arith.addf %133, %132 : vector<1x128xf32>
    %135 = arith.divf %133, %134 : vector<1x128xf32>
    %136 = arith.mulf %135, %129 : vector<1x128xf32>
    %c0_32 = arith.constant 0 : index
    %c0_33 = arith.constant 0 : index
    %137 = vector.load %arg1[%c0_32, %c0_33] : memref<128x512xf32, #tpu.memory_space<vmem>>, vector<128x512xf32>
    %cst_34 = arith.constant dense<0.000000e+00> : vector<1x512xf32>
    %138 = tpu.matmul %136, %137, %cst_34 {dimension_numbers = #tpu.dot_dimension_numbers<[1], [0], [0], [1], [0, 0, 1, 1], [], []>} : vector<1x128xf32>, vector<128x512xf32>, vector<1x512xf32> -> vector<1x512xf32>
    %139 = vector.extract_strided_slice %9 {offsets = [5, 0], sizes = [1, 512], strides = [1, 1]} : vector<8x512xf32> to vector<1x512xf32>
    %140 = arith.addf %138, %139 : vector<1x512xf32>
    %141 = vector.extract_strided_slice %140 {offsets = [0, 0], sizes = [1, 256], strides = [1, 1]} : vector<1x512xf32> to vector<1x256xf32>
    %142 = arith.negf %141 : vector<1x256xf32>
    %143 = math.exp %142 : vector<1x256xf32>
    %cst_35 = arith.constant 1.000000e+00 : f32
    %144 = vector.broadcast %cst_35 : f32 to vector<1x256xf32>
    %145 = arith.addf %144, %143 : vector<1x256xf32>
    %146 = arith.divf %144, %145 : vector<1x256xf32>
    %147 = vector.extract_strided_slice %140 {offsets = [0, 384], sizes = [1, 128], strides = [1, 1]} : vector<1x512xf32> to vector<1x128xf32>
    %148 = math.tanh %147 : vector<1x128xf32>
    %149 = vector.extract_strided_slice %146 {offsets = [0, 0], sizes = [1, 128], strides = [1, 1]} : vector<1x256xf32> to vector<1x128xf32>
    %150 = vector.extract_strided_slice %146 {offsets = [0, 128], sizes = [1, 128], strides = [1, 1]} : vector<1x256xf32> to vector<1x128xf32>
    %151 = arith.mulf %150, %128 : vector<1x128xf32>
    %152 = arith.mulf %149, %148 : vector<1x128xf32>
    %153 = arith.addf %151, %152 : vector<1x128xf32>
    %154 = math.tanh %153 : vector<1x128xf32>
    %155 = vector.extract_strided_slice %140 {offsets = [0, 256], sizes = [1, 128], strides = [1, 1]} : vector<1x512xf32> to vector<1x128xf32>
    %156 = arith.negf %155 : vector<1x128xf32>
    %157 = math.exp %156 : vector<1x128xf32>
    %cst_36 = arith.constant 1.000000e+00 : f32
    %158 = vector.broadcast %cst_36 : f32 to vector<1x128xf32>
    %159 = arith.addf %158, %157 : vector<1x128xf32>
    %160 = arith.divf %158, %159 : vector<1x128xf32>
    %161 = arith.mulf %160, %154 : vector<1x128xf32>
    %c0_37 = arith.constant 0 : index
    %c0_38 = arith.constant 0 : index
    %162 = vector.load %arg1[%c0_37, %c0_38] : memref<128x512xf32, #tpu.memory_space<vmem>>, vector<128x512xf32>
    %cst_39 = arith.constant dense<0.000000e+00> : vector<1x512xf32>
    %163 = tpu.matmul %161, %162, %cst_39 {dimension_numbers = #tpu.dot_dimension_numbers<[1], [0], [0], [1], [0, 0, 1, 1], [], []>} : vector<1x128xf32>, vector<128x512xf32>, vector<1x512xf32> -> vector<1x512xf32>
    %164 = vector.extract_strided_slice %9 {offsets = [6, 0], sizes = [1, 512], strides = [1, 1]} : vector<8x512xf32> to vector<1x512xf32>
    %165 = arith.addf %163, %164 : vector<1x512xf32>
    %166 = vector.extract_strided_slice %165 {offsets = [0, 0], sizes = [1, 256], strides = [1, 1]} : vector<1x512xf32> to vector<1x256xf32>
    %167 = arith.negf %166 : vector<1x256xf32>
    %168 = math.exp %167 : vector<1x256xf32>
    %cst_40 = arith.constant 1.000000e+00 : f32
    %169 = vector.broadcast %cst_40 : f32 to vector<1x256xf32>
    %170 = arith.addf %169, %168 : vector<1x256xf32>
    %171 = arith.divf %169, %170 : vector<1x256xf32>
    %172 = vector.extract_strided_slice %165 {offsets = [0, 384], sizes = [1, 128], strides = [1, 1]} : vector<1x512xf32> to vector<1x128xf32>
    %173 = math.tanh %172 : vector<1x128xf32>
    %174 = vector.extract_strided_slice %171 {offsets = [0, 0], sizes = [1, 128], strides = [1, 1]} : vector<1x256xf32> to vector<1x128xf32>
    %175 = vector.extract_strided_slice %171 {offsets = [0, 128], sizes = [1, 128], strides = [1, 1]} : vector<1x256xf32> to vector<1x128xf32>
    %176 = arith.mulf %175, %153 : vector<1x128xf32>
    %177 = arith.mulf %174, %173 : vector<1x128xf32>
    %178 = arith.addf %176, %177 : vector<1x128xf32>
    %179 = math.tanh %178 : vector<1x128xf32>
    %180 = vector.extract_strided_slice %165 {offsets = [0, 256], sizes = [1, 128], strides = [1, 1]} : vector<1x512xf32> to vector<1x128xf32>
    %181 = arith.negf %180 : vector<1x128xf32>
    %182 = math.exp %181 : vector<1x128xf32>
    %cst_41 = arith.constant 1.000000e+00 : f32
    %183 = vector.broadcast %cst_41 : f32 to vector<1x128xf32>
    %184 = arith.addf %183, %182 : vector<1x128xf32>
    %185 = arith.divf %183, %184 : vector<1x128xf32>
    %186 = arith.mulf %185, %179 : vector<1x128xf32>
    %c0_42 = arith.constant 0 : index
    %c0_43 = arith.constant 0 : index
    %187 = vector.load %arg1[%c0_42, %c0_43] : memref<128x512xf32, #tpu.memory_space<vmem>>, vector<128x512xf32>
    %cst_44 = arith.constant dense<0.000000e+00> : vector<1x512xf32>
    %188 = tpu.matmul %186, %187, %cst_44 {dimension_numbers = #tpu.dot_dimension_numbers<[1], [0], [0], [1], [0, 0, 1, 1], [], []>} : vector<1x128xf32>, vector<128x512xf32>, vector<1x512xf32> -> vector<1x512xf32>
    %189 = vector.extract_strided_slice %9 {offsets = [7, 0], sizes = [1, 512], strides = [1, 1]} : vector<8x512xf32> to vector<1x512xf32>
    %190 = arith.addf %188, %189 : vector<1x512xf32>
    %191 = vector.extract_strided_slice %190 {offsets = [0, 0], sizes = [1, 256], strides = [1, 1]} : vector<1x512xf32> to vector<1x256xf32>
    %192 = arith.negf %191 : vector<1x256xf32>
    %193 = math.exp %192 : vector<1x256xf32>
    %cst_45 = arith.constant 1.000000e+00 : f32
    %194 = vector.broadcast %cst_45 : f32 to vector<1x256xf32>
    %195 = arith.addf %194, %193 : vector<1x256xf32>
    %196 = arith.divf %194, %195 : vector<1x256xf32>
    %197 = vector.extract_strided_slice %190 {offsets = [0, 384], sizes = [1, 128], strides = [1, 1]} : vector<1x512xf32> to vector<1x128xf32>
    %198 = math.tanh %197 : vector<1x128xf32>
    %199 = vector.extract_strided_slice %196 {offsets = [0, 0], sizes = [1, 128], strides = [1, 1]} : vector<1x256xf32> to vector<1x128xf32>
    %200 = vector.extract_strided_slice %196 {offsets = [0, 128], sizes = [1, 128], strides = [1, 1]} : vector<1x256xf32> to vector<1x128xf32>
    %201 = arith.mulf %200, %178 : vector<1x128xf32>
    %202 = arith.mulf %199, %198 : vector<1x128xf32>
    %203 = arith.addf %201, %202 : vector<1x128xf32>
    %204 = math.tanh %203 : vector<1x128xf32>
    %205 = vector.extract_strided_slice %190 {offsets = [0, 256], sizes = [1, 128], strides = [1, 1]} : vector<1x512xf32> to vector<1x128xf32>
    %206 = arith.negf %205 : vector<1x128xf32>
    %207 = math.exp %206 : vector<1x128xf32>
    %cst_46 = arith.constant 1.000000e+00 : f32
    %208 = vector.broadcast %cst_46 : f32 to vector<1x128xf32>
    %209 = arith.addf %208, %207 : vector<1x128xf32>
    %210 = arith.divf %208, %209 : vector<1x128xf32>
    %211 = arith.mulf %210, %204 : vector<1x128xf32>
    %212 = arith.mulf %211, %2 : vector<1x128xf32>
    %cst_47 = arith.constant dense<0.000000e+00> : vector<1xf32>
    %213 = vector.multi_reduction <add>, %212, %cst_47 [1] : vector<1x128xf32> to vector<1xf32>
    %214 = vector.shape_cast %213 : vector<1xf32> to vector<1x1xf32>
    %215 = arith.addf %214, %3 : vector<1x1xf32>
    %c0_48 = arith.constant 0 : index
    %c0_49 = arith.constant 0 : index
    %216 = vector.load %arg3[%c0_48, %c0_49] : memref<1x1xf32, #tpu.memory_space<vmem>>, vector<1x1xf32>
    tpu.vector_store %arg3[%c0_48, %c0_49], %215 {strides = array<i32>} : memref<1x1xf32, #tpu.memory_space<vmem>>, vector<1x1xf32>,
    return
  }
}

</mosaic_0001>

<llo_original>
// kernel: receipt_lstm_forward.1
$region0: #{receipt_lstm_forward.1}
  #allocation0 [shape = 'u32[]', space=smem, size = 0x4, offset = 0x4, fixed_abs, tag = 'smem constant byte address 0x4 - core index']
  #allocation1 [shape = 'u32[144,128]{1,0:T(1,128)}', space=vmem, size = 0x12000, scoped, tag = 'internal scratch']
  %s0 = inlined_call_operand.vmem [shape: f32[8,1], index: 0, kind: input, shape index: {}]
  %s1 = inlined_call_operand.hbm [shape: f32[128,512], index: 1, kind: input, shape index: {}]
  %s2 = inlined_call_operand.vmem [shape: f32[1,1280], index: 2, kind: input, shape index: {}]
  %s3 = inlined_call_operand.hbm [shape: f32[1,1], index: 3, kind: output, shape index: {}]
  %s4 = sld [smem:[#allocation0]]
  $region26: #{receipt_lstm_forward.1} parent=0
    _
  %s6 = ssub.s32 1, %s4
  %s7 = scalar_select 0, %s6, %s4
  $region1: #{receipt_lstm_forward.1} parent=0
    #allocation2 [shape = 'u8[262144]{0}', space=vmem, size = 0x40000, scoped, tag = 'input window, operand 1, single buffered']
    #allocation3 [shape = 's32[1]{0}', space=sflag, size = 0x4, scoped, tag = 'scoped memory for receipt_lstm_forward.1']
    #allocation4 [shape = 's32[1]{0}', space=sflag, size = 0x4, scoped, tag = 'scoped memory for receipt_lstm_forward.1']
    #allocation5 [shape = 'u8[512]{0}', space=vmem, size = 0x400, scoped, tag = 'output window, operand 0, single buffered']
    %8 = vsyncpa [#allocation3], 0
    %9 = vsyncpa [#allocation4], 0
    // Predicated region
    $region2: #{receipt_lstm_forward.1} parent=1 // pred_check
      _
    $region3: #{receipt_lstm_forward.1} parent=1 // pred_check_branch
      %11 = sbr.rel (0) target = $region5
    $region4: #{receipt_lstm_forward.1} parent=1 // pred_region
      _
    $region5: #{receipt_lstm_forward.1} parent=1 // pred_fallthru
      _
    // Predicated region
    $region6: #{receipt_lstm_forward.1} parent=1 // pred_check
      _
    $region7: #{receipt_lstm_forward.1} parent=1 // pred_check_branch
      %13 = sbr.rel (0) target = $region9
    $region8: #{receipt_lstm_forward.1} parent=1 // pred_region
      %s15 = ssub.s32 8192, 8192
      %16 = vsyncadd [#allocation3], %s15
      %s17 = sshll.u32 [#allocation2], 4
      %s18 = int_to_ptr.vmem [resolvable:$true] %s17
      %23 = dma.hbm_to_vmem [thread:$0]  %s1, 8192, %s18, [#allocation3], 512, 512, 32
    $region9: #{receipt_lstm_forward.1} parent=1 // pred_fallthru
      _
    // Predicated region
    $region10: #{receipt_lstm_forward.1} parent=1 // pred_check
      _
    $region11: #{receipt_lstm_forward.1} parent=1 // pred_check_branch
      %25 = sbr.rel (0) target = $region13
    $region12: #{receipt_lstm_forward.1} parent=1 // pred_region
      _
    $region13: #{receipt_lstm_forward.1} parent=1 // pred_fallthru
      _
    // Predicated region
    $region14: #{receipt_lstm_forward.1} parent=1 // pred_check
      _
    $region15: #{receipt_lstm_forward.1} parent=1 // pred_check_branch
      %27 = sbr.rel (0) target = $region17
    $region16: #{receipt_lstm_forward.1} parent=1 // pred_region
      %28 = dma.done [#allocation3], 8192
    $region17: #{receipt_lstm_forward.1} parent=1 // pred_fallthru
      _
    %v29 = vld [vmem:[%s2] sm:$0xf]
    %v30 = vld [vmem:[%s2 + $0x4] sm:$0xf]
    %v31 = vld [vmem:[%s2 + $0x8] sm:$0x1]
    %v32 = vld [vmem:[%s2 + $0x9] sm:$0x1]
    %v33 = vld [vmem:[%s0] sm:$0xff]
    %35 = vset.pattern.permute.xlu0 0
    %36 = vperm.xlu0 %35, %v33
    %v37 = vpop.permute.xlu0 %36
    %v40 = vlaneseq
    %v41 = vshrl.u32 %v40, 7
    %v42 = vsub.s32 0, %v41
    %v43 = vrot.slane %v29, %v42
    %v44 = vlaneseq
    %v45 = vshrl.u32 %v44, 7
    %v46 = vsub.s32 1, %v45
    %v47 = vrot.slane %v29, %v46
    %v48 = vlaneseq
    %v49 = vshrl.u32 %v48, 7
    %v50 = vsub.s32 2, %v49
    %v51 = vrot.slane %v29, %v50
    %v52 = vlaneseq
    %v53 = vshrl.u32 %v52, 7
    %v54 = vsub.s32 3, %v53
    %v55 = vrot.slane %v29, %v54
    %v60 = vmul.f32 %v37, %v43
    %v61 = vmul.f32 %v37, %v47
    %v62 = vmul.f32 %v37, %v51
    %v63 = vmul.f32 %v37, %v55
    %v65 = vlaneseq
    %v66 = vshrl.u32 %v65, 7
    %v67 = vsub.s32 0, %v66
    %v68 = vrot.slane %v30, %v67
    %v69 = vlaneseq
    %v70 = vshrl.u32 %v69, 7
    %v71 = vsub.s32 1, %v70
    %v72 = vrot.slane %v30, %v71
    %v73 = vlaneseq
    %v74 = vshrl.u32 %v73, 7
    %v75 = vsub.s32 2, %v74
    %v76 = vrot.slane %v30, %v75
    %v77 = vlaneseq
    %v78 = vshrl.u32 %v77, 7
    %v79 = vsub.s32 3, %v78
    %v80 = vrot.slane %v30, %v79
    %v85 = vadd.f32 %v60, %v68
    %v86 = vadd.f32 %v61, %v72
    %v87 = vadd.f32 %v62, %v76
    %v88 = vadd.f32 %v63, %v80
    %v89 = vld [vmem:[#allocation2] sm:$0xff]
    %v90 = vld [vmem:[#allocation2 + $0x8] sm:$0xff]
    %v91 = vld [vmem:[#allocation2 + $0x10] sm:$0xff]
    %v92 = vld [vmem:[#allocation2 + $0x18] sm:$0xff]
    %v93 = vld [vmem:[#allocation2 + $0x20] sm:$0xff]
    %v94 = vld [vmem:[#allocation2 + $0x28] sm:$0xff]
    %v95 = vld [vmem:[#allocation2 + $0x30] sm:$0xff]
    %v96 = vld [vmem:[#allocation2 + $0x38] sm:$0xff]
    %v97 = vld [vmem:[#allocation2 + $0x40] sm:$0xff]
    %v98 = vld [vmem:[#allocation2 + $0x48] sm:$0xff]
    %v99 = vld [vmem:[#allocation2 + $0x50] sm:$0xff]
    %v100 = vld [vmem:[#allocation2 + $0x58] sm:$0xff]
    %v101 = vld [vmem:[#allocation2 + $0x60] sm:$0xff]
    %v102 = vld [vmem:[#allocation2 + $0x68] sm:$0xff]
    %v103 = vld [vmem:[#allocation2 + $0x70] sm:$0xff]
    %v104 = vld [vmem:[#allocation2 + $0x78] sm:$0xff]
    %v105 = vld [vmem:[#allocation2 + $0x80] sm:$0xff]
    %v106 = vld [vmem:[#allocation2 + $0x88] sm:$0xff]
    %v107 = vld [vmem:[#allocation2 + $0x90] sm:$0xff]
    %v108 = vld [vmem:[#allocation2 + $0x98] sm:$0xff]
    %v109 = vld [vmem:[#allocation2 + $0xa0] sm:$0xff]
    %v110 = vld [vmem:[#allocation2 + $0xa8] sm:$0xff]
    %v111 = vld [vmem:[#allocation2 + $0xb0] sm:$0xff]
    %v112 = vld [vmem:[#allocation2 + $0xb8] sm:$0xff]
    %v113 = vld [vmem:[#allocation2 + $0xc0] sm:$0xff]
    %v114 = vld [vmem:[#allocation2 + $0xc8] sm:$0xff]
    %v115 = vld [vmem:[#allocation2 + $0xd0] sm:$0xff]
    %v116 = vld [vmem:[#allocation2 + $0xd8] sm:$0xff]
    %v117 = vld [vmem:[#allocation2 + $0xe0] sm:$0xff]
    %v118 = vld [vmem:[#allocation2 + $0xe8] sm:$0xff]
    %v119 = vld [vmem:[#allocation2 + $0xf0] sm:$0xff]
    %v120 = vld [vmem:[#allocation2 + $0xf8] sm:$0xff]
    %v121 = vld [vmem:[#allocation2 + $0x100] sm:$0xff]
    %v122 = vld [vmem:[#allocation2 + $0x108] sm:$0xff]
    %v123 = vld [vmem:[#allocation2 + $0x110] sm:$0xff]
    %v124 = vld [vmem:[#allocation2 + $0x118] sm:$0xff]
    %v125 = vld [vmem:[#allocation2 + $0x120] sm:$0xff]
    %v126 = vld [vmem:[#allocation2 + $0x128] sm:$0xff]
    %v127 = vld [vmem:[#allocation2 + $0x130] sm:$0xff]
    %v128 = vld [vmem:[#allocation2 + $0x138] sm:$0xff]
    %v129 = vld [vmem:[#allocation2 + $0x140] sm:$0xff]
    %v130 = vld [vmem:[#allocation2 + $0x148] sm:$0xff]
    %v131 = vld [vmem:[#allocation2 + $0x150] sm:$0xff]
    %v132 = vld [vmem:[#allocation2 + $0x158] sm:$0xff]
    %v133 = vld [vmem:[#allocation2 + $0x160] sm:$0xff]
    %v134 = vld [vmem:[#allocation2 + $0x168] sm:$0xff]
    %v135 = vld [vmem:[#allocation2 + $0x170] sm:$0xff]
    %v136 = vld [vmem:[#allocation2 + $0x178] sm:$0xff]
    %v137 = vld [vmem:[#allocation2 + $0x180] sm:$0xff]
    %v138 = vld [vmem:[#allocation2 + $0x188] sm:$0xff]
    %v139 = vld [vmem:[#allocation2 + $0x190] sm:$0xff]
    %v140 = vld [vmem:[#allocation2 + $0x198] sm:$0xff]
    %v141 = vld [vmem:[#allocation2 + $0x1a0] sm:$0xff]
    %v142 = vld [vmem:[#allocation2 + $0x1a8] sm:$0xff]
    %v143 = vld [vmem:[#allocation2 + $0x1b0] sm:$0xff]
    %v144 = vld [vmem:[#allocation2 + $0x1b8] sm:$0xff]
    %v145 = vld [vmem:[#allocation2 + $0x1c0] sm:$0xff]
    %v146 = vld [vmem:[#allocation2 + $0x1c8] sm:$0xff]
    %v147 = vld [vmem:[#allocation2 + $0x1d0] sm:$0xff]
    %v148 = vld [vmem:[#allocation2 + $0x1d8] sm:$0xff]
    %v149 = vld [vmem:[#allocation2 + $0x1e0] sm:$0xff]
    %v150 = vld [vmem:[#allocation2 + $0x1e8] sm:$0xff]
    %v151 = vld [vmem:[#allocation2 + $0x1f0] sm:$0xff]
    %v152 = vld [vmem:[#allocation2 + $0x1f8] sm:$0xff]
    %153 = vmatprep.subr.mxu0 %v90
    %154 = vmatpush1.msra.mxu0 %v89
    %155 = vmatprep.subr.mxu0 %v94
    %156 = vmatpush1.msra.mxu0 %v93
    %157 = vmatprep.subr.mxu0 %v98
    %158 = vmatpush1.msra.mxu0 %v97
    %159 = vmatprep.subr.mxu0 %v102
    %160 = vmatpush1.msra.mxu0 %v101
    %161 = vmatprep.subr.mxu0 %v106
    %162 = vmatpush1.msra.mxu0 %v105
    %163 = vmatprep.subr.mxu0 %v110
    %164 = vmatpush1.msra.mxu0 %v109
    %165 = vmatprep.subr.mxu0 %v114
    %166 = vmatpush1.msra.mxu0 %v113
    %167 = vmatprep.subr.mxu0 %v118
    %168 = vmatpush1.msra.mxu0 %v117
    %169 = vmatprep.subr.mxu0 %v122
    %170 = vmatpush1.msra.mxu0 %v121
    %171 = vmatprep.subr.mxu0 %v126
    %172 = vmatpush1.msra.mxu0 %v125
    %173 = vmatprep.subr.mxu0 %v130
    %174 = vmatpush1.msra.mxu0 %v129
    %175 = vmatprep.subr.mxu0 %v134
    %176 = vmatpush1.msra.mxu0 %v133
    %177 = vmatprep.subr.mxu0 %v138
    %178 = vmatpush1.msra.mxu0 %v137
    %179 = vmatprep.subr.mxu0 %v142
    %180 = vmatpush1.msra.mxu0 %v141
    %181 = vmatprep.subr.mxu0 %v146
    %182 = vmatpush1.msra.mxu0 %v145
    %183 = vmatprep.subr.mxu0 %v150
    %184 = vmatpush1.msra.mxu0 %v149
    %185 = vmatprep.subr.mxu0 0.0
    %186 = vmatpush1.msra.mxu0 0.0
    %187 = vmatprep.subr.mxu0 0.0
    %188 = vmatpush1.msra.mxu0 0.0
    %189 = vmatprep.subr.mxu0 0.0
    %190 = vmatpush1.msra.mxu0 0.0
    %191 = vmatprep.subr.mxu0 0.0
    %192 = vmatpush1.msra.mxu0 0.0
    %193 = vmatprep.subr.mxu0 0.0
    %194 = vmatpush1.msra.mxu0 0.0
    %195 = vmatprep.subr.mxu0 0.0
    %196 = vmatpush1.msra.mxu0 0.0
    %197 = vmatprep.subr.mxu0 0.0
    %198 = vmatpush1.msra.mxu0 0.0
    %199 = vmatprep.subr.mxu0 0.0
    %200 = vmatpush1.msra.mxu0 0.0
    %201 = vmatprep.subr.mxu0 0.0
    %202 = vmatpush1.msra.mxu0 0.0
    %203 = vmatprep.subr.mxu0 0.0
    %204 = vmatpush1.msra.mxu0 0.0
    %205 = vmatprep.subr.mxu0 0.0
    %206 = vmatpush1.msra.mxu0 0.0
    %207 = vmatprep.subr.mxu0 0.0
    %208 = vmatpush1.msra.mxu0 0.0
    %209 = vmatprep.subr.mxu0 0.0
    %210 = vmatpush1.msra.mxu0 0.0
    %211 = vmatprep.subr.mxu0 0.0
    %212 = vmatpush1.msra.mxu0 0.0
    %213 = vmatprep.subr.mxu0 0.0
    %214 = vmatpush1.msra.mxu0 0.0
    %215 = vmatprep.subr.mxu0 0.0
    %216 = vmatpush1.msra.mxu0 0.0
    %217 = vmatprep.mubr.f32.mxu0 0.0
    %218 = vmatmul.mubr.f32.gmra.mrb[0].mxu0 0.0
    %v219 = vpop.f32.mrb[0].mxu0
    %v220 = vadd.f32 %v85, %v219
    %v221 = vpop.f32.mrb[0].mxu0
    %v222 = vadd.f32 %v86, %v221
    %223 = vdwg.mxu0
    %224 = vmatprep.subr.mxu0 %v92
    %225 = vmatpush1.msra.mxu0 %v91
    %226 = vmatprep.subr.mxu0 %v96
    %227 = vmatpush1.msra.mxu0 %v95
    %228 = vmatprep.subr.mxu0 %v100
    %229 = vmatpush1.msra.mxu0 %v99
    %230 = vmatprep.subr.mxu0 %v104
    %231 = vmatpush1.msra.mxu0 %v103
    %232 = vmatprep.subr.mxu0 %v108
    %233 = vmatpush1.msra.mxu0 %v107
    %234 = vmatprep.subr.mxu0 %v112
    %235 = vmatpush1.msra.mxu0 %v111
    %236 = vmatprep.subr.mxu0 %v116
    %237 = vmatpush1.msra.mxu0 %v115
    %238 = vmatprep.subr.mxu0 %v120
    %239 = vmatpush1.msra.mxu0 %v119
    %240 = vmatprep.subr.mxu0 %v124
    %241 = vmatpush1.msra.mxu0 %v123
    %242 = vmatprep.subr.mxu0 %v128
    %243 = vmatpush1.msra.mxu0 %v127
    %244 = vmatprep.subr.mxu0 %v132
    %245 = vmatpush1.msra.mxu0 %v131
    %246 = vmatprep.subr.mxu0 %v136
    %247 = vmatpush1.msra.mxu0 %v135
    %248 = vmatprep.subr.mxu0 %v140
    %249 = vmatpush1.msra.mxu0 %v139
    %250 = vmatprep.subr.mxu0 %v144
    %251 = vmatpush1.msra.mxu0 %v143
    %252 = vmatprep.subr.mxu0 %v148
    %253 = vmatpush1.msra.mxu0 %v147
    %254 = vmatprep.subr.mxu0 %v152
    %255 = vmatpush1.msra.mxu0 %v151
    %256 = vmatprep.subr.mxu0 0.0
    %257 = vmatpush1.msra.mxu0 0.0
    %258 = vmatprep.subr.mxu0 0.0
    %259 = vmatpush1.msra.mxu0 0.0
    %260 = vmatprep.subr.mxu0 0.0
    %261 = vmatpush1.msra.mxu0 0.0
    %262 = vmatprep.subr.mxu0 0.0
    %263 = vmatpush1.msra.mxu0 0.0
    %264 = vmatprep.subr.mxu0 0.0
    %265 = vmatpush1.msra.mxu0 0.0
    %266 = vmatprep.subr.mxu0 0.0
    %267 = vmatpush1.msra.mxu0 0.0
    %268 = vmatprep.subr.mxu0 0.0
    %269 = vmatpush1.msra.mxu0 0.0
    %270 = vmatprep.subr.mxu0 0.0
    %271 = vmatpush1.msra.mxu0 0.0
    %272 = vmatprep.subr.mxu0 0.0
    %273 = vmatpush1.msra.mxu0 0.0
    %274 = vmatprep.subr.mxu0 0.0
    %275 = vmatpush1.msra.mxu0 0.0
    %276 = vmatprep.subr.mxu0 0.0
    %277 = vmatpush1.msra.mxu0 0.0
    %278 = vmatprep.subr.mxu0 0.0
    %279 = vmatpush1.msra.mxu0 0.0
    %280 = vmatprep.subr.mxu0 0.0
    %281 = vmatpush1.msra.mxu0 0.0
    %282 = vmatprep.subr.mxu0 0.0
    %283 = vmatpush1.msra.mxu0 0.0
    %284 = vmatprep.subr.mxu0 0.0
    %285 = vmatpush1.msra.mxu0 0.0
    %286 = vmatprep.subr.mxu0 0.0
    %287 = vmatpush1.msra.mxu0 0.0
    %288 = vmatprep.mubr.f32.mxu0 0.0
    %289 = vmatmul.mubr.f32.gmra.mrb[0].mxu0 0.0
    %v290 = vpop.f32.mrb[0].mxu0
    %v291 = vadd.f32 %v87, %v290
    %v292 = vpop.f32.mrb[0].mxu0
    %v293 = vadd.f32 %v88, %v292
    %294 = vdwg.mxu0
    %v295 = vxor.u32 %v220, 2147483648
    %v296 = vxor.u32 %v222, 2147483648
    %v297 = vmul.f32 %v295, 1.442695
    %v298 = vpow.pop %v297
    %v299 = vmul.f32 %v296, 1.442695
    %v300 = vpow.pop %v299
    %v301 = vadd.f32 %v298, 1.0
    %v302 = vadd.f32 %v300, 1.0
    %v303 = vrcp.pop %v301
    %v304 = vmul.f32 1.0, %v303
    %v305 = vrcp.pop %v302
    %v306 = vmul.f32 1.0, %v305
    %v307 = vtanh.pop %v293
    %v308 = vmul.f32 %v306, 0.0
    %v309 = vmul.f32 %v304, %v307
    %v310 = vadd.f32 %v308, %v309
    %v311 = vtanh.pop %v310
    %v312 = vxor.u32 %v291, 2147483648
    %v313 = vmul.f32 %v312, 1.442695
    %v314 = vpow.pop %v313
    %v315 = vadd.f32 %v314, 1.0
    %v316 = vrcp.pop %v315
    %v317 = vmul.f32 1.0, %v316
    %v318 = vmul.f32 %v317, %v311
    %v323 = vrot.slane %v85, 1
    %v324 = vrot.slane %v86, 1
    %v325 = vrot.slane %v87, 1
    %v326 = vrot.slane %v88, 1
    %331 = vmatprep.subr.mxu0 %v90
    %332 = vmatpush1.msra.mxu0 %v89
    %333 = vmatprep.subr.mxu0 %v94
    %334 = vmatpush1.msra.mxu0 %v93
    %335 = vmatprep.subr.mxu0 %v98
    %336 = vmatpush1.msra.mxu0 %v97
    %337 = vmatprep.subr.mxu0 %v102
    %338 = vmatpush1.msra.mxu0 %v101
    %339 = vmatprep.subr.mxu0 %v106
    %340 = vmatpush1.msra.mxu0 %v105
    %341 = vmatprep.subr.mxu0 %v110
    %342 = vmatpush1.msra.mxu0 %v109
    %343 = vmatprep.subr.mxu0 %v114
    %344 = vmatpush1.msra.mxu0 %v113
    %345 = vmatprep.subr.mxu0 %v118
    %346 = vmatpush1.msra.mxu0 %v117
    %347 = vmatprep.subr.mxu0 %v122
    %348 = vmatpush1.msra.mxu0 %v121
    %349 = vmatprep.subr.mxu0 %v126
    %350 = vmatpush1.msra.mxu0 %v125
    %351 = vmatprep.subr.mxu0 %v130
    %352 = vmatpush1.msra.mxu0 %v129
    %353 = vmatprep.subr.mxu0 %v134
    %354 = vmatpush1.msra.mxu0 %v133
    %355 = vmatprep.subr.mxu0 %v138
    %356 = vmatpush1.msra.mxu0 %v137
    %357 = vmatprep.subr.mxu0 %v142
    %358 = vmatpush1.msra.mxu0 %v141
    %359 = vmatprep.subr.mxu0 %v146
    %360 = vmatpush1.msra.mxu0 %v145
    %361 = vmatprep.subr.mxu0 %v150
    %362 = vmatpush1.msra.mxu0 %v149
    %363 = vmatprep.subr.mxu0 0.0
    %364 = vmatpush1.msra.mxu0 0.0
    %365 = vmatprep.subr.mxu0 0.0
    %366 = vmatpush1.msra.mxu0 0.0
    %367 = vmatprep.subr.mxu0 0.0
    %368 = vmatpush1.msra.mxu0 0.0
    %369 = vmatprep.subr.mxu0 0.0
    %370 = vmatpush1.msra.mxu0 0.0
    %371 = vmatprep.subr.mxu0 0.0
    %372 = vmatpush1.msra.mxu0 0.0
    %373 = vmatprep.subr.mxu0 0.0
    %374 = vmatpush1.msra.mxu0 0.0
    %375 = vmatprep.subr.mxu0 0.0
    %376 = vmatpush1.msra.mxu0 0.0
    %377 = vmatprep.subr.mxu0 0.0
    %378 = vmatpush1.msra.mxu0 0.0
    %379 = vmatprep.subr.mxu0 0.0
    %380 = vmatpush1.msra.mxu0 0.0
    %381 = vmatprep.subr.mxu0 0.0
    %382 = vmatpush1.msra.mxu0 0.0
    %383 = vmatprep.subr.mxu0 0.0
    %384 = vmatpush1.msra.mxu0 0.0
    %385 = vmatprep.subr.mxu0 0.0
    %386 = vmatpush1.msra.mxu0 0.0
    %387 = vmatprep.subr.mxu0 0.0
    %388 = vmatpush1.msra.mxu0 0.0
    %389 = vmatprep.subr.mxu0 0.0
    %390 = vmatpush1.msra.mxu0 0.0
    %391 = vmatprep.subr.mxu0 0.0
    %392 = vmatpush1.msra.mxu0 0.0
    %393 = vmatprep.subr.mxu0 0.0
    %394 = vmatpush1.msra.mxu0 0.0
    %395 = vmatprep.mubr.f32.mxu0 0.0
    %396 = vmatmul.mubr.f32.gmra.mrb[0].mxu0 %v318
    %v397 = vpop.f32.mrb[0].mxu0
    %v398 = vadd.f32 %v323, %v397
    %v399 = vpop.f32.mrb[0].mxu0
    %v400 = vadd.f32 %v324, %v399
    %401 = vdwg.mxu0
    %402 = vmatprep.subr.mxu0 %v92
    %403 = vmatpush1.msra.mxu0 %v91
    %404 = vmatprep.subr.mxu0 %v96
    %405 = vmatpush1.msra.mxu0 %v95
    %406 = vmatprep.subr.mxu0 %v100
    %407 = vmatpush1.msra.mxu0 %v99
    %408 = vmatprep.subr.mxu0 %v104
    %409 = vmatpush1.msra.mxu0 %v103
    %410 = vmatprep.subr.mxu0 %v108
    %411 = vmatpush1.msra.mxu0 %v107
    %412 = vmatprep.subr.mxu0 %v112
    %413 = vmatpush1.msra.mxu0 %v111
    %414 = vmatprep.subr.mxu0 %v116
    %415 = vmatpush1.msra.mxu0 %v115
    %416 = vmatprep.subr.mxu0 %v120
    %417 = vmatpush1.msra.mxu0 %v119
    %418 = vmatprep.subr.mxu0 %v124
    %419 = vmatpush1.msra.mxu0 %v123
    %420 = vmatprep.subr.mxu0 %v128
    %421 = vmatpush1.msra.mxu0 %v127
    %422 = vmatprep.subr.mxu0 %v132
    %423 = vmatpush1.msra.mxu0 %v131
    %424 = vmatprep.subr.mxu0 %v136
    %425 = vmatpush1.msra.mxu0 %v135
    %426 = vmatprep.subr.mxu0 %v140
    %427 = vmatpush1.msra.mxu0 %v139
    %428 = vmatprep.subr.mxu0 %v144
    %429 = vmatpush1.msra.mxu0 %v143
    %430 = vmatprep.subr.mxu0 %v148
    %431 = vmatpush1.msra.mxu0 %v147
    %432 = vmatprep.subr.mxu0 %v152
    %433 = vmatpush1.msra.mxu0 %v151
    %434 = vmatprep.subr.mxu0 0.0
    %435 = vmatpush1.msra.mxu0 0.0
    %436 = vmatprep.subr.mxu0 0.0
    %437 = vmatpush1.msra.mxu0 0.0
    %438 = vmatprep.subr.mxu0 0.0
    %439 = vmatpush1.msra.mxu0 0.0
    %440 = vmatprep.subr.mxu0 0.0
    %441 = vmatpush1.msra.mxu0 0.0
    %442 = vmatprep.subr.mxu0 0.0
    %443 = vmatpush1.msra.mxu0 0.0
    %444 = vmatprep.subr.mxu0 0.0
    %445 = vmatpush1.msra.mxu0 0.0
    %446 = vmatprep.subr.mxu0 0.0
    %447 = vmatpush1.msra.mxu0 0.0
    %448 = vmatprep.subr.mxu0 0.0
    %449 = vmatpush1.msra.mxu0 0.0
    %450 = vmatprep.subr.mxu0 0.0
    %451 = vmatpush1.msra.mxu0 0.0
    %452 = vmatprep.subr.mxu0 0.0
    %453 = vmatpush1.msra.mxu0 0.0
    %454 = vmatprep.subr.mxu0 0.0
    %455 = vmatpush1.msra.mxu0 0.0
    %456 = vmatprep.subr.mxu0 0.0
    %457 = vmatpush1.msra.mxu0 0.0
    %458 = vmatprep.subr.mxu0 0.0
    %459 = vmatpush1.msra.mxu0 0.0
    %460 = vmatprep.subr.mxu0 0.0
    %461 = vmatpush1.msra.mxu0 0.0
    %462 = vmatprep.subr.mxu0 0.0
    %463 = vmatpush1.msra.mxu0 0.0
    %464 = vmatprep.subr.mxu0 0.0
    %465 = vmatpush1.msra.mxu0 0.0
    %466 = vmatprep.mubr.f32.mxu0 0.0
    %467 = vmatmul.mubr.f32.gmra.mrb[0].mxu0 %v318
    %v468 = vpop.f32.mrb[0].mxu0
    %v469 = vadd.f32 %v325, %v468
    %v470 = vpop.f32.mrb[0].mxu0
    %v471 = vadd.f32 %v326, %v470
    %472 = vdwg.mxu0
    %v473 = vxor.u32 %v398, 2147483648
    %v474 = vxor.u32 %v400, 2147483648
    %v475 = vmul.f32 %v473, 1.442695
    %v476 = vpow.pop %v475
    %v477 = vmul.f32 %v474, 1.442695
    %v478 = vpow.pop %v477
    %v479 = vadd.f32 %v476, 1.0
    %v480 = vadd.f32 %v478, 1.0
    %v481 = vrcp.pop %v479
    %v482 = vmul.f32 1.0, %v481
    %v483 = vrcp.pop %v480
    %v484 = vmul.f32 1.0, %v483
    %v485 = vtanh.pop %v471
    %v486 = vmul.f32 %v484, %v310
    %v487 = vmul.f32 %v482, %v485
    %v488 = vadd.f32 %v486, %v487
    %v489 = vtanh.pop %v488
    %v490 = vxor.u32 %v469, 2147483648
    %v491 = vmul.f32 %v490, 1.442695
    %v492 = vpow.pop %v491
    %v493 = vadd.f32 %v492, 1.0
    %v494 = vrcp.pop %v493
    %v495 = vmul.f32 1.0, %v494
    %v496 = vmul.f32 %v495, %v489
    %v497 = vrot.slane %v85, 2
    %v498 = vrot.slane %v86, 2
    %v499 = vrot.slane %v87, 2
    %v500 = vrot.slane %v88, 2
    %505 = vmatprep.subr.mxu0 %v90
    %506 = vmatpush1.msra.mxu0 %v89
    %507 = vmatprep.subr.mxu0 %v94
    %508 = vmatpush1.msra.mxu0 %v93
    %509 = vmatprep.subr.mxu0 %v98
    %510 = vmatpush1.msra.mxu0 %v97
    %511 = vmatprep.subr.mxu0 %v102
    %512 = vmatpush1.msra.mxu0 %v101
    %513 = vmatprep.subr.mxu0 %v106
    %514 = vmatpush1.msra.mxu0 %v105
    %515 = vmatprep.subr.mxu0 %v110
    %516 = vmatpush1.msra.mxu0 %v109
    %517 = vmatprep.subr.mxu0 %v114
    %518 = vmatpush1.msra.mxu0 %v113
    %519 = vmatprep.subr.mxu0 %v118
    %520 = vmatpush1.msra.mxu0 %v117
    %521 = vmatprep.subr.mxu0 %v122
    %522 = vmatpush1.msra.mxu0 %v121
    %523 = vmatprep.subr.mxu0 %v126
    %524 = vmatpush1.msra.mxu0 %v125
    %525 = vmatprep.subr.mxu0 %v130
    %526 = vmatpush1.msra.mxu0 %v129
    %527 = vmatprep.subr.mxu0 %v134
    %528 = vmatpush1.msra.mxu0 %v133
    %529 = vmatprep.subr.mxu0 %v138
    %530 = vmatpush1.msra.mxu0 %v137
    %531 = vmatprep.subr.mxu0 %v142
    %532 = vmatpush1.msra.mxu0 %v141
    %533 = vmatprep.subr.mxu0 %v146
    %534 = vmatpush1.msra.mxu0 %v145
    %535 = vmatprep.subr.mxu0 %v150
    %536 = vmatpush1.msra.mxu0 %v149
    %537 = vmatprep.subr.mxu0 0.0
    %538 = vmatpush1.msra.mxu0 0.0
    %539 = vmatprep.subr.mxu0 0.0
    %540 = vmatpush1.msra.mxu0 0.0
    %541 = vmatprep.subr.mxu0 0.0
    %542 = vmatpush1.msra.mxu0 0.0
    %543 = vmatprep.subr.mxu0 0.0
    %544 = vmatpush1.msra.mxu0 0.0
    %545 = vmatprep.subr.mxu0 0.0
    %546 = vmatpush1.msra.mxu0 0.0
    %547 = vmatprep.subr.mxu0 0.0
    %548 = vmatpush1.msra.mxu0 0.0
    %549 = vmatprep.subr.mxu0 0.0
    %550 = vmatpush1.msra.mxu0 0.0
    %551 = vmatprep.subr.mxu0 0.0
    %552 = vmatpush1.msra.mxu0 0.0
    %553 = vmatprep.subr.mxu0 0.0
    %554 = vmatpush1.msra.mxu0 0.0
    %555 = vmatprep.subr.mxu0 0.0
    %556 = vmatpush1.msra.mxu0 0.0
    %557 = vmatprep.subr.mxu0 0.0
    %558 = vmatpush1.msra.mxu0 0.0
    %559 = vmatprep.subr.mxu0 0.0
    %560 = vmatpush1.msra.mxu0 0.0
    %561 = vmatprep.subr.mxu0 0.0
    %562 = vmatpush1.msra.mxu0 0.0
    %563 = vmatprep.subr.mxu0 0.0
    %564 = vmatpush1.msra.mxu0 0.0
    %565 = vmatprep.subr.mxu0 0.0
    %566 = vmatpush1.msra.mxu0 0.0
    %567 = vmatprep.subr.mxu0 0.0
    %568 = vmatpush1.msra.mxu0 0.0
    %569 = vmatprep.mubr.f32.mxu0 0.0
    %570 = vmatmul.mubr.f32.gmra.mrb[0].mxu0 %v496
    %v571 = vpop.f32.mrb[0].mxu0
    %v572 = vadd.f32 %v497, %v571
    %v573 = vpop.f32.mrb[0].mxu0
    %v574 = vadd.f32 %v498, %v573
    %575 = vdwg.mxu0
    %576 = vmatprep.subr.mxu0 %v92
    %577 = vmatpush1.msra.mxu0 %v91
    %578 = vmatprep.subr.mxu0 %v96
    %579 = vmatpush1.msra.mxu0 %v95
    %580 = vmatprep.subr.mxu0 %v100
    %581 = vmatpush1.msra.mxu0 %v99
    %582 = vmatprep.subr.mxu0 %v104
    %583 = vmatpush1.msra.mxu0 %v103
    %584 = vmatprep.subr.mxu0 %v108
    %585 = vmatpush1.msra.mxu0 %v107
    %586 = vmatprep.subr.mxu0 %v112
    %587 = vmatpush1.msra.mxu0 %v111
    %588 = vmatprep.subr.mxu0 %v116
    %589 = vmatpush1.msra.mxu0 %v115
    %590 = vmatprep.subr.mxu0 %v120
    %591 = vmatpush1.msra.mxu0 %v119
    %592 = vmatprep.subr.mxu0 %v124
    %593 = vmatpush1.msra.mxu0 %v123
    %594 = vmatprep.subr.mxu0 %v128
    %595 = vmatpush1.msra.mxu0 %v127
    %596 = vmatprep.subr.mxu0 %v132
    %597 = vmatpush1.msra.mxu0 %v131
    %598 = vmatprep.subr.mxu0 %v136
    %599 = vmatpush1.msra.mxu0 %v135
    %600 = vmatprep.subr.mxu0 %v140
    %601 = vmatpush1.msra.mxu0 %v139
    %602 = vmatprep.subr.mxu0 %v144
    %603 = vmatpush1.msra.mxu0 %v143
    %604 = vmatprep.subr.mxu0 %v148
    %605 = vmatpush1.msra.mxu0 %v147
    %606 = vmatprep.subr.mxu0 %v152
    %607 = vmatpush1.msra.mxu0 %v151
    %608 = vmatprep.subr.mxu0 0.0
    %609 = vmatpush1.msra.mxu0 0.0
    %610 = vmatprep.subr.mxu0 0.0
    %611 = vmatpush1.msra.mxu0 0.0
    %612 = vmatprep.subr.mxu0 0.0
    %613 = vmatpush1.msra.mxu0 0.0
    %614 = vmatprep.subr.mxu0 0.0
    %615 = vmatpush1.msra.mxu0 0.0
    %616 = vmatprep.subr.mxu0 0.0
    %617 = vmatpush1.msra.mxu0 0.0
    %618 = vmatprep.subr.mxu0 0.0
    %619 = vmatpush1.msra.mxu0 0.0
    %620 = vmatprep.subr.mxu0 0.0
    %621 = vmatpush1.msra.mxu0 0.0
    %622 = vmatprep.subr.mxu0 0.0
    %623 = vmatpush1.msra.mxu0 0.0
    %624 = vmatprep.subr.mxu0 0.0
    %625 = vmatpush1.msra.mxu0 0.0
    %626 = vmatprep.subr.mxu0 0.0
    %627 = vmatpush1.msra.mxu0 0.0
    %628 = vmatprep.subr.mxu0 0.0
    %629 = vmatpush1.msra.mxu0 0.0
    %630 = vmatprep.subr.mxu0 0.0
    %631 = vmatpush1.msra.mxu0 0.0
    %632 = vmatprep.subr.mxu0 0.0
    %633 = vmatpush1.msra.mxu0 0.0
    %634 = vmatprep.subr.mxu0 0.0
    %635 = vmatpush1.msra.mxu0 0.0
    %636 = vmatprep.subr.mxu0 0.0
    %637 = vmatpush1.msra.mxu0 0.0
    %638 = vmatprep.subr.mxu0 0.0
    %639 = vmatpush1.msra.mxu0 0.0
    %640 = vmatprep.mubr.f32.mxu0 0.0
    %641 = vmatmul.mubr.f32.gmra.mrb[0].mxu0 %v496
    %v642 = vpop.f32.mrb[0].mxu0
    %v643 = vadd.f32 %v499, %v642
    %v644 = vpop.f32.mrb[0].mxu0
    %v645 = vadd.f32 %v500, %v644
    %646 = vdwg.mxu0
    %v647 = vxor.u32 %v572, 2147483648
    %v648 = vxor.u32 %v574, 2147483648
    %v649 = vmul.f32 %v647, 1.442695
    %v650 = vpow.pop %v649
    %v651 = vmul.f32 %v648, 1.442695
    %v652 = vpow.pop %v651
    %v653 = vadd.f32 %v650, 1.0
    %v654 = vadd.f32 %v652, 1.0
    %v655 = vrcp.pop %v653
    %v656 = vmul.f32 1.0, %v655
    %v657 = vrcp.pop %v654
    %v658 = vmul.f32 1.0, %v657
    %v659 = vtanh.pop %v645
    %v660 = vmul.f32 %v658, %v488
    %v661 = vmul.f32 %v656, %v659
    %v662 = vadd.f32 %v660, %v661
    %v663 = vtanh.pop %v662
    %v664 = vxor.u32 %v643, 2147483648
    %v665 = vmul.f32 %v664, 1.442695
    %v666 = vpow.pop %v665
    %v667 = vadd.f32 %v666, 1.0
    %v668 = vrcp.pop %v667
    %v669 = vmul.f32 1.0, %v668
    %v670 = vmul.f32 %v669, %v663
    %v671 = vrot.slane %v85, 3
    %v672 = vrot.slane %v86, 3
    %v673 = vrot.slane %v87, 3
    %v674 = vrot.slane %v88, 3
    %679 = vmatprep.subr.mxu0 %v90
    %680 = vmatpush1.msra.mxu0 %v89
    %681 = vmatprep.subr.mxu0 %v94
    %682 = vmatpush1.msra.mxu0 %v93
    %683 = vmatprep.subr.mxu0 %v98
    %684 = vmatpush1.msra.mxu0 %v97
    %685 = vmatprep.subr.mxu0 %v102
    %686 = vmatpush1.msra.mxu0 %v101
    %687 = vmatprep.subr.mxu0 %v106
    %688 = vmatpush1.msra.mxu0 %v105
    %689 = vmatprep.subr.mxu0 %v110
    %690 = vmatpush1.msra.mxu0 %v109
    %691 = vmatprep.subr.mxu0 %v114
    %692 = vmatpush1.msra.mxu0 %v113
    %693 = vmatprep.subr.mxu0 %v118
    %694 = vmatpush1.msra.mxu0 %v117
    %695 = vmatprep.subr.mxu0 %v122
    %696 = vmatpush1.msra.mxu0 %v121
    %697 = vmatprep.subr.mxu0 %v126
    %698 = vmatpush1.msra.mxu0 %v125
    %699 = vmatprep.subr.mxu0 %v130
    %700 = vmatpush1.msra.mxu0 %v129
    %701 = vmatprep.subr.mxu0 %v134
    %702 = vmatpush1.msra.mxu0 %v133
    %703 = vmatprep.subr.mxu0 %v138
    %704 = vmatpush1.msra.mxu0 %v137
    %705 = vmatprep.subr.mxu0 %v142
    %706 = vmatpush1.msra.mxu0 %v141
    %707 = vmatprep.subr.mxu0 %v146
    %708 = vmatpush1.msra.mxu0 %v145
    %709 = vmatprep.subr.mxu0 %v150
    %710 = vmatpush1.msra.mxu0 %v149
    %711 = vmatprep.subr.mxu0 0.0
    %712 = vmatpush1.msra.mxu0 0.0
    %713 = vmatprep.subr.mxu0 0.0
    %714 = vmatpush1.msra.mxu0 0.0
    %715 = vmatprep.subr.mxu0 0.0
    %716 = vmatpush1.msra.mxu0 0.0
    %717 = vmatprep.subr.mxu0 0.0
    %718 = vmatpush1.msra.mxu0 0.0
    %719 = vmatprep.subr.mxu0 0.0
    %720 = vmatpush1.msra.mxu0 0.0
    %721 = vmatprep.subr.mxu0 0.0
    %722 = vmatpush1.msra.mxu0 0.0
    %723 = vmatprep.subr.mxu0 0.0
    %724 = vmatpush1.msra.mxu0 0.0
    %725 = vmatprep.subr.mxu0 0.0
    %726 = vmatpush1.msra.mxu0 0.0
    %727 = vmatprep.subr.mxu0 0.0
    %728 = vmatpush1.msra.mxu0 0.0
    %729 = vmatprep.subr.mxu0 0.0
    %730 = vmatpush1.msra.mxu0 0.0
    %731 = vmatprep.subr.mxu0 0.0
    %732 = vmatpush1.msra.mxu0 0.0
    %733 = vmatprep.subr.mxu0 0.0
    %734 = vmatpush1.msra.mxu0 0.0
    %735 = vmatprep.subr.mxu0 0.0
    %736 = vmatpush1.msra.mxu0 0.0
    %737 = vmatprep.subr.mxu0 0.0
    %738 = vmatpush1.msra.mxu0 0.0
    %739 = vmatprep.subr.mxu0 0.0
    %740 = vmatpush1.msra.mxu0 0.0
    %741 = vmatprep.subr.mxu0 0.0
    %742 = vmatpush1.msra.mxu0 0.0
    %743 = vmatprep.mubr.f32.mxu0 0.0
    %744 = vmatmul.mubr.f32.gmra.mrb[0].mxu0 %v670
    %v745 = vpop.f32.mrb[0].mxu0
    %v746 = vadd.f32 %v671, %v745
    %v747 = vpop.f32.mrb[0].mxu0
    %v748 = vadd.f32 %v672, %v747
    %749 = vdwg.mxu0
    %750 = vmatprep.subr.mxu0 %v92
    %751 = vmatpush1.msra.mxu0 %v91
    %752 = vmatprep.subr.mxu0 %v96
    %753 = vmatpush1.msra.mxu0 %v95
    %754 = vmatprep.subr.mxu0 %v100
    %755 = vmatpush1.msra.mxu0 %v99
    %756 = vmatprep.subr.mxu0 %v104
    %757 = vmatpush1.msra.mxu0 %v103
    %758 = vmatprep.subr.mxu0 %v108
    %759 = vmatpush1.msra.mxu0 %v107
    %760 = vmatprep.subr.mxu0 %v112
    %761 = vmatpush1.msra.mxu0 %v111
    %762 = vmatprep.subr.mxu0 %v116
    %763 = vmatpush1.msra.mxu0 %v115
    %764 = vmatprep.subr.mxu0 %v120
    %765 = vmatpush1.msra.mxu0 %v119
    %766 = vmatprep.subr.mxu0 %v124
    %767 = vmatpush1.msra.mxu0 %v123
    %768 = vmatprep.subr.mxu0 %v128
    %769 = vmatpush1.msra.mxu0 %v127
    %770 = vmatprep.subr.mxu0 %v132
    %771 = vmatpush1.msra.mxu0 %v131
    %772 = vmatprep.subr.mxu0 %v136
    %773 = vmatpush1.msra.mxu0 %v135
    %774 = vmatprep.subr.mxu0 %v140
    %775 = vmatpush1.msra.mxu0 %v139
    %776 = vmatprep.subr.mxu0 %v144
    %777 = vmatpush1.msra.mxu0 %v143
    %778 = vmatprep.subr.mxu0 %v148
    %779 = vmatpush1.msra.mxu0 %v147
    %780 = vmatprep.subr.mxu0 %v152
    %781 = vmatpush1.msra.mxu0 %v151
    %782 = vmatprep.subr.mxu0 0.0
    %783 = vmatpush1.msra.mxu0 0.0
    %784 = vmatprep.subr.mxu0 0.0
    %785 = vmatpush1.msra.mxu0 0.0
    %786 = vmatprep.subr.mxu0 0.0
    %787 = vmatpush1.msra.mxu0 0.0
    %788 = vmatprep.subr.mxu0 0.0
    %789 = vmatpush1.msra.mxu0 0.0
    %790 = vmatprep.subr.mxu0 0.0
    %791 = vmatpush1.msra.mxu0 0.0
    %792 = vmatprep.subr.mxu0 0.0
    %793 = vmatpush1.msra.mxu0 0.0
    %794 = vmatprep.subr.mxu0 0.0
    %795 = vmatpush1.msra.mxu0 0.0
    %796 = vmatprep.subr.mxu0 0.0
    %797 = vmatpush1.msra.mxu0 0.0
    %798 = vmatprep.subr.mxu0 0.0
    %799 = vmatpush1.msra.mxu0 0.0
    %800 = vmatprep.subr.mxu0 0.0
    %801 = vmatpush1.msra.mxu0 0.0
    %802 = vmatprep.subr.mxu0 0.0
    %803 = vmatpush1.msra.mxu0 0.0
    %804 = vmatprep.subr.mxu0 0.0
    %805 = vmatpush1.msra.mxu0 0.0
    %806 = vmatprep.subr.mxu0 0.0
    %807 = vmatpush1.msra.mxu0 0.0
    %808 = vmatprep.subr.mxu0 0.0
    %809 = vmatpush1.msra.mxu0 0.0
    %810 = vmatprep.subr.mxu0 0.0
    %811 = vmatpush1.msra.mxu0 0.0
    %812 = vmatprep.subr.mxu0 0.0
    %813 = vmatpush1.msra.mxu0 0.0
    %814 = vmatprep.mubr.f32.mxu0 0.0
    %815 = vmatmul.mubr.f32.gmra.mrb[0].mxu0 %v670
    %v816 = vpop.f32.mrb[0].mxu0
    %v817 = vadd.f32 %v673, %v816
    %v818 = vpop.f32.mrb[0].mxu0
    %v819 = vadd.f32 %v674, %v818
    %820 = vdwg.mxu0
    %v821 = vxor.u32 %v746, 2147483648
    %v822 = vxor.u32 %v748, 2147483648
    %v823 = vmul.f32 %v821, 1.442695
    %v824 = vpow.pop %v823
    %v825 = vmul.f32 %v822, 1.442695
    %v826 = vpow.pop %v825
    %v827 = vadd.f32 %v824, 1.0
    %v828 = vadd.f32 %v826, 1.0
    %v829 = vrcp.pop %v827
    %v830 = vmul.f32 1.0, %v829
    %v831 = vrcp.pop %v828
    %v832 = vmul.f32 1.0, %v831
    %v833 = vtanh.pop %v819
    %v834 = vmul.f32 %v832, %v662
    %v835 = vmul.f32 %v830, %v833
    %v836 = vadd.f32 %v834, %v835
    %v837 = vtanh.pop %v836
    %v838 = vxor.u32 %v817, 2147483648
    %v839 = vmul.f32 %v838, 1.442695
    %v840 = vpow.pop %v839
    %v841 = vadd.f32 %v840, 1.0
    %v842 = vrcp.pop %v841
    %v843 = vmul.f32 1.0, %v842
    %v844 = vmul.f32 %v843, %v837
    %v845 = vrot.slane %v85, 4
    %v846 = vrot.slane %v86, 4
    %v847 = vrot.slane %v87, 4
    %v848 = vrot.slane %v88, 4
    %853 = vmatprep.subr.mxu0 %v90
    %854 = vmatpush1.msra.mxu0 %v89
    %855 = vmatprep.subr.mxu0 %v94
    %856 = vmatpush1.msra.mxu0 %v93
    %857 = vmatprep.subr.mxu0 %v98
    %858 = vmatpush1.msra.mxu0 %v97
    %859 = vmatprep.subr.mxu0 %v102
    %860 = vmatpush1.msra.mxu0 %v101
    %861 = vmatprep.subr.mxu0 %v106
    %862 = vmatpush1.msra.mxu0 %v105
    %863 = vmatprep.subr.mxu0 %v110
    %864 = vmatpush1.msra.mxu0 %v109
    %865 = vmatprep.subr.mxu0 %v114
    %866 = vmatpush1.msra.mxu0 %v113
    %867 = vmatprep.subr.mxu0 %v118
    %868 = vmatpush1.msra.mxu0 %v117
    %869 = vmatprep.subr.mxu0 %v122
    %870 = vmatpush1.msra.mxu0 %v121
    %871 = vmatprep.subr.mxu0 %v126
    %872 = vmatpush1.msra.mxu0 %v125
    %873 = vmatprep.subr.mxu0 %v130
    %874 = vmatpush1.msra.mxu0 %v129
    %875 = vmatprep.subr.mxu0 %v134
    %876 = vmatpush1.msra.mxu0 %v133
    %877 = vmatprep.subr.mxu0 %v138
    %878 = vmatpush1.msra.mxu0 %v137
    %879 = vmatprep.subr.mxu0 %v142
    %880 = vmatpush1.msra.mxu0 %v141
    %881 = vmatprep.subr.mxu0 %v146
    %882 = vmatpush1.msra.mxu0 %v145
    %883 = vmatprep.subr.mxu0 %v150
    %884 = vmatpush1.msra.mxu0 %v149
    %885 = vmatprep.subr.mxu0 0.0
    %886 = vmatpush1.msra.mxu0 0.0
    %887 = vmatprep.subr.mxu0 0.0
    %888 = vmatpush1.msra.mxu0 0.0
    %889 = vmatprep.subr.mxu0 0.0
    %890 = vmatpush1.msra.mxu0 0.0
    %891 = vmatprep.subr.mxu0 0.0
    %892 = vmatpush1.msra.mxu0 0.0
    %893 = vmatprep.subr.mxu0 0.0
    %894 = vmatpush1.msra.mxu0 0.0
    %895 = vmatprep.subr.mxu0 0.0
    %896 = vmatpush1.msra.mxu0 0.0
    %897 = vmatprep.subr.mxu0 0.0
    %898 = vmatpush1.msra.mxu0 0.0
    %899 = vmatprep.subr.mxu0 0.0
    %900 = vmatpush1.msra.mxu0 0.0
    %901 = vmatprep.subr.mxu0 0.0
    %902 = vmatpush1.msra.mxu0 0.0
    %903 = vmatprep.subr.mxu0 0.0
    %904 = vmatpush1.msra.mxu0 0.0
    %905 = vmatprep.subr.mxu0 0.0
    %906 = vmatpush1.msra.mxu0 0.0
    %907 = vmatprep.subr.mxu0 0.0
    %908 = vmatpush1.msra.mxu0 0.0
    %909 = vmatprep.subr.mxu0 0.0
    %910 = vmatpush1.msra.mxu0 0.0
    %911 = vmatprep.subr.mxu0 0.0
    %912 = vmatpush1.msra.mxu0 0.0
    %913 = vmatprep.subr.mxu0 0.0
    %914 = vmatpush1.msra.mxu0 0.0
    %915 = vmatprep.subr.mxu0 0.0
    %916 = vmatpush1.msra.mxu0 0.0
    %917 = vmatprep.mubr.f32.mxu0 0.0
    %918 = vmatmul.mubr.f32.gmra.mrb[0].mxu0 %v844
    %v919 = vpop.f32.mrb[0].mxu0
    %v920 = vadd.f32 %v845, %v919
    %v921 = vpop.f32.mrb[0].mxu0
    %v922 = vadd.f32 %v846, %v921
    %923 = vdwg.mxu0
    %924 = vmatprep.subr.mxu0 %v92
    %925 = vmatpush1.msra.mxu0 %v91
    %926 = vmatprep.subr.mxu0 %v96
    %927 = vmatpush1.msra.mxu0 %v95
    %928 = vmatprep.subr.mxu0 %v100
    %929 = vmatpush1.msra.mxu0 %v99
    %930 = vmatprep.subr.mxu0 %v104
    %931 = vmatpush1.msra.mxu0 %v103
    %932 = vmatprep.subr.mxu0 %v108
    %933 = vmatpush1.msra.mxu0 %v107
    %934 = vmatprep.subr.mxu0 %v112
    %935 = vmatpush1.msra.mxu0 %v111
    %936 = vmatprep.subr.mxu0 %v116
    %937 = vmatpush1.msra.mxu0 %v115
    %938 = vmatprep.subr.mxu0 %v120
    %939 = vmatpush1.msra.mxu0 %v119
    %940 = vmatprep.subr.mxu0 %v124
    %941 = vmatpush1.msra.mxu0 %v123
    %942 = vmatprep.subr.mxu0 %v128
    %943 = vmatpush1.msra.mxu0 %v127
    %944 = vmatprep.subr.mxu0 %v132
    %945 = vmatpush1.msra.mxu0 %v131
    %946 = vmatprep.subr.mxu0 %v136
    %947 = vmatpush1.msra.mxu0 %v135
    %948 = vmatprep.subr.mxu0 %v140
    %949 = vmatpush1.msra.mxu0 %v139
    %950 = vmatprep.subr.mxu0 %v144
    %951 = vmatpush1.msra.mxu0 %v143
    %952 = vmatprep.subr.mxu0 %v148
    %953 = vmatpush1.msra.mxu0 %v147
    %954 = vmatprep.subr.mxu0 %v152
    %955 = vmatpush1.msra.mxu0 %v151
    %956 = vmatprep.subr.mxu0 0.0
    %957 = vmatpush1.msra.mxu0 0.0
    %958 = vmatprep.subr.mxu0 0.0
    %959 = vmatpush1.msra.mxu0 0.0
    %960 = vmatprep.subr.mxu0 0.0
    %961 = vmatpush1.msra.mxu0 0.0
    %962 = vmatprep.subr.mxu0 0.0
    %963 = vmatpush1.msra.mxu0 0.0
    %964 = vmatprep.subr.mxu0 0.0
    %965 = vmatpush1.msra.mxu0 0.0
    %966 = vmatprep.subr.mxu0 0.0
    %967 = vmatpush1.msra.mxu0 0.0
    %968 = vmatprep.subr.mxu0 0.0
    %969 = vmatpush1.msra.mxu0 0.0
    %970 = vmatprep.subr.mxu0 0.0
    %971 = vmatpush1.msra.mxu0 0.0
    %972 = vmatprep.subr.mxu0 0.0
    %973 = vmatpush1.msra.mxu0 0.0
    %974 = vmatprep.subr.mxu0 0.0
    %975 = vmatpush1.msra.mxu0 0.0
    %976 = vmatprep.subr.mxu0 0.0
    %977 = vmatpush1.msra.mxu0 0.0
    %978 = vmatprep.subr.mxu0 0.0
    %979 = vmatpush1.msra.mxu0 0.0
    %980 = vmatprep.subr.mxu0 0.0
    %981 = vmatpush1.msra.mxu0 0.0
    %982 = vmatprep.subr.mxu0 0.0
    %983 = vmatpush1.msra.mxu0 0.0
    %984 = vmatprep.subr.mxu0 0.0
    %985 = vmatpush1.msra.mxu0 0.0
    %986 = vmatprep.subr.mxu0 0.0
    %987 = vmatpush1.msra.mxu0 0.0
    %988 = vmatprep.mubr.f32.mxu0 0.0
    %989 = vmatmul.mubr.f32.gmra.mrb[0].mxu0 %v844
    %v990 = vpop.f32.mrb[0].mxu0
    %v991 = vadd.f32 %v847, %v990
    %v992 = vpop.f32.mrb[0].mxu0
    %v993 = vadd.f32 %v848, %v992
    %994 = vdwg.mxu0
    %v995 = vxor.u32 %v920, 2147483648
    %v996 = vxor.u32 %v922, 2147483648
    %v997 = vmul.f32 %v995, 1.442695
    %v998 = vpow.pop %v997
    %v999 = vmul.f32 %v996, 1.442695
    %v1000 = vpow.pop %v999
    %v1001 = vadd.f32 %v998, 1.0
    %v1002 = vadd.f32 %v1000, 1.0
    %v1003 = vrcp.pop %v1001
    %v1004 = vmul.f32 1.0, %v1003
    %v1005 = vrcp.pop %v1002
    %v1006 = vmul.f32 1.0, %v1005
    %v1007 = vtanh.pop %v993
    %v1008 = vmul.f32 %v1006, %v836
    %v1009 = vmul.f32 %v1004, %v1007
    %v1010 = vadd.f32 %v1008, %v1009
    %v1011 = vtanh.pop %v1010
    %v1012 = vxor.u32 %v991, 2147483648
    %v1013 = vmul.f32 %v1012, 1.442695
    %v1014 = vpow.pop %v1013
    %v1015 = vadd.f32 %v1014, 1.0
    %v1016 = vrcp.pop %v1015
    %v1017 = vmul.f32 1.0, %v1016
    %v1018 = vmul.f32 %v1017, %v1011
    %v1019 = vrot.slane %v85, 5
    %v1020 = vrot.slane %v86, 5
    %v1021 = vrot.slane %v87, 5
    %v1022 = vrot.slane %v88, 5
    %1027 = vmatprep.subr.mxu0 %v90
    %1028 = vmatpush1.msra.mxu0 %v89
    %1029 = vmatprep.subr.mxu0 %v94
    %1030 = vmatpush1.msra.mxu0 %v93
    %1031 = vmatprep.subr.mxu0 %v98
    %1032 = vmatpush1.msra.mxu0 %v97
    %1033 = vmatprep.subr.mxu0 %v102
    %1034 = vmatpush1.msra.mxu0 %v101
    %1035 = vmatprep.subr.mxu0 %v106
    %1036 = vmatpush1.msra.mxu0 %v105
    %1037 = vmatprep.subr.mxu0 %v110
    %1038 = vmatpush1.msra.mxu0 %v109
    %1039 = vmatprep.subr.mxu0 %v114
    %1040 = vmatpush1.msra.mxu0 %v113
    %1041 = vmatprep.subr.mxu0 %v118
    %1042 = vmatpush1.msra.mxu0 %v117
    %1043 = vmatprep.subr.mxu0 %v122
    %1044 = vmatpush1.msra.mxu0 %v121
    %1045 = vmatprep.subr.mxu0 %v126
    %1046 = vmatpush1.msra.mxu0 %v125
    %1047 = vmatprep.subr.mxu0 %v130
    %1048 = vmatpush1.msra.mxu0 %v129
    %1049 = vmatprep.subr.mxu0 %v134
    %1050 = vmatpush1.msra.mxu0 %v133
    %1051 = vmatprep.subr.mxu0 %v138
    %1052 = vmatpush1.msra.mxu0 %v137
    %1053 = vmatprep.subr.mxu0 %v142
    %1054 = vmatpush1.msra.mxu0 %v141
    %1055 = vmatprep.subr.mxu0 %v146
    %1056 = vmatpush1.msra.mxu0 %v145
    %1057 = vmatprep.subr.mxu0 %v150
    %1058 = vmatpush1.msra.mxu0 %v149
    %1059 = vmatprep.subr.mxu0 0.0
    %1060 = vmatpush1.msra.mxu0 0.0
    %1061 = vmatprep.subr.mxu0 0.0
    %1062 = vmatpush1.msra.mxu0 0.0
    %1063 = vmatprep.subr.mxu0 0.0
    %1064 = vmatpush1.msra.mxu0 0.0
    %1065 = vmatprep.subr.mxu0 0.0
    %1066 = vmatpush1.msra.mxu0 0.0
    %1067 = vmatprep.subr.mxu0 0.0
    %1068 = vmatpush1.msra.mxu0 0.0
    %1069 = vmatprep.subr.mxu0 0.0
    %1070 = vmatpush1.msra.mxu0 0.0
    %1071 = vmatprep.subr.mxu0 0.0
    %1072 = vmatpush1.msra.mxu0 0.0
    %1073 = vmatprep.subr.mxu0 0.0
    %1074 = vmatpush1.msra.mxu0 0.0
    %1075 = vmatprep.subr.mxu0 0.0
    %1076 = vmatpush1.msra.mxu0 0.0
    %1077 = vmatprep.subr.mxu0 0.0
    %1078 = vmatpush1.msra.mxu0 0.0
    %1079 = vmatprep.subr.mxu0 0.0
    %1080 = vmatpush1.msra.mxu0 0.0
    %1081 = vmatprep.subr.mxu0 0.0
    %1082 = vmatpush1.msra.mxu0 0.0
    %1083 = vmatprep.subr.mxu0 0.0
    %1084 = vmatpush1.msra.mxu0 0.0
    %1085 = vmatprep.subr.mxu0 0.0
    %1086 = vmatpush1.msra.mxu0 0.0
    %1087 = vmatprep.subr.mxu0 0.0
    %1088 = vmatpush1.msra.mxu0 0.0
    %1089 = vmatprep.subr.mxu0 0.0
    %1090 = vmatpush1.msra.mxu0 0.0
    %1091 = vmatprep.mubr.f32.mxu0 0.0
    %1092 = vmatmul.mubr.f32.gmra.mrb[0].mxu0 %v1018
    %v1093 = vpop.f32.mrb[0].mxu0
    %v1094 = vadd.f32 %v1019, %v1093
    %v1095 = vpop.f32.mrb[0].mxu0
    %v1096 = vadd.f32 %v1020, %v1095
    %1097 = vdwg.mxu0
    %1098 = vmatprep.subr.mxu0 %v92
    %1099 = vmatpush1.msra.mxu0 %v91
    %1100 = vmatprep.subr.mxu0 %v96
    %1101 = vmatpush1.msra.mxu0 %v95
    %1102 = vmatprep.subr.mxu0 %v100
    %1103 = vmatpush1.msra.mxu0 %v99
    %1104 = vmatprep.subr.mxu0 %v104
    %1105 = vmatpush1.msra.mxu0 %v103
    %1106 = vmatprep.subr.mxu0 %v108
    %1107 = vmatpush1.msra.mxu0 %v107
    %1108 = vmatprep.subr.mxu0 %v112
    %1109 = vmatpush1.msra.mxu0 %v111
    %1110 = vmatprep.subr.mxu0 %v116
    %1111 = vmatpush1.msra.mxu0 %v115
    %1112 = vmatprep.subr.mxu0 %v120
    %1113 = vmatpush1.msra.mxu0 %v119
    %1114 = vmatprep.subr.mxu0 %v124
    %1115 = vmatpush1.msra.mxu0 %v123
    %1116 = vmatprep.subr.mxu0 %v128
    %1117 = vmatpush1.msra.mxu0 %v127
    %1118 = vmatprep.subr.mxu0 %v132
    %1119 = vmatpush1.msra.mxu0 %v131
    %1120 = vmatprep.subr.mxu0 %v136
    %1121 = vmatpush1.msra.mxu0 %v135
    %1122 = vmatprep.subr.mxu0 %v140
    %1123 = vmatpush1.msra.mxu0 %v139
    %1124 = vmatprep.subr.mxu0 %v144
    %1125 = vmatpush1.msra.mxu0 %v143
    %1126 = vmatprep.subr.mxu0 %v148
    %1127 = vmatpush1.msra.mxu0 %v147
    %1128 = vmatprep.subr.mxu0 %v152
    %1129 = vmatpush1.msra.mxu0 %v151
    %1130 = vmatprep.subr.mxu0 0.0
    %1131 = vmatpush1.msra.mxu0 0.0
    %1132 = vmatprep.subr.mxu0 0.0
    %1133 = vmatpush1.msra.mxu0 0.0
    %1134 = vmatprep.subr.mxu0 0.0
    %1135 = vmatpush1.msra.mxu0 0.0
    %1136 = vmatprep.subr.mxu0 0.0
    %1137 = vmatpush1.msra.mxu0 0.0
    %1138 = vmatprep.subr.mxu0 0.0
    %1139 = vmatpush1.msra.mxu0 0.0
    %1140 = vmatprep.subr.mxu0 0.0
    %1141 = vmatpush1.msra.mxu0 0.0
    %1142 = vmatprep.subr.mxu0 0.0
    %1143 = vmatpush1.msra.mxu0 0.0
    %1144 = vmatprep.subr.mxu0 0.0
    %1145 = vmatpush1.msra.mxu0 0.0
    %1146 = vmatprep.subr.mxu0 0.0
    %1147 = vmatpush1.msra.mxu0 0.0
    %1148 = vmatprep.subr.mxu0 0.0
    %1149 = vmatpush1.msra.mxu0 0.0
    %1150 = vmatprep.subr.mxu0 0.0
    %1151 = vmatpush1.msra.mxu0 0.0
    %1152 = vmatprep.subr.mxu0 0.0
    %1153 = vmatpush1.msra.mxu0 0.0
    %1154 = vmatprep.subr.mxu0 0.0
    %1155 = vmatpush1.msra.mxu0 0.0
    %1156 = vmatprep.subr.mxu0 0.0
    %1157 = vmatpush1.msra.mxu0 0.0
    %1158 = vmatprep.subr.mxu0 0.0
    %1159 = vmatpush1.msra.mxu0 0.0
    %1160 = vmatprep.subr.mxu0 0.0
    %1161 = vmatpush1.msra.mxu0 0.0
    %1162 = vmatprep.mubr.f32.mxu0 0.0
    %1163 = vmatmul.mubr.f32.gmra.mrb[0].mxu0 %v1018
    %v1164 = vpop.f32.mrb[0].mxu0
    %v1165 = vadd.f32 %v1021, %v1164
    %v1166 = vpop.f32.mrb[0].mxu0
    %v1167 = vadd.f32 %v1022, %v1166
    %1168 = vdwg.mxu0
    %v1169 = vxor.u32 %v1094, 2147483648
    %v1170 = vxor.u32 %v1096, 2147483648
    %v1171 = vmul.f32 %v1169, 1.442695
    %v1172 = vpow.pop %v1171
    %v1173 = vmul.f32 %v1170, 1.442695
    %v1174 = vpow.pop %v1173
    %v1175 = vadd.f32 %v1172, 1.0
    %v1176 = vadd.f32 %v1174, 1.0
    %v1177 = vrcp.pop %v1175
    %v1178 = vmul.f32 1.0, %v1177
    %v1179 = vrcp.pop %v1176
    %v1180 = vmul.f32 1.0, %v1179
    %v1181 = vtanh.pop %v1167
    %v1182 = vmul.f32 %v1180, %v1010
    %v1183 = vmul.f32 %v1178, %v1181
    %v1184 = vadd.f32 %v1182, %v1183
    %v1185 = vtanh.pop %v1184
    %v1186 = vxor.u32 %v1165, 2147483648
    %v1187 = vmul.f32 %v1186, 1.442695
    %v1188 = vpow.pop %v1187
    %v1189 = vadd.f32 %v1188, 1.0
    %v1190 = vrcp.pop %v1189
    %v1191 = vmul.f32 1.0, %v1190
    %v1192 = vmul.f32 %v1191, %v1185
    %v1193 = vrot.slane %v85, 6
    %v1194 = vrot.slane %v86, 6
    %v1195 = vrot.slane %v87, 6
    %v1196 = vrot.slane %v88, 6
    %1201 = vmatprep.subr.mxu0 %v90
    %1202 = vmatpush1.msra.mxu0 %v89
    %1203 = vmatprep.subr.mxu0 %v94
    %1204 = vmatpush1.msra.mxu0 %v93
    %1205 = vmatprep.subr.mxu0 %v98
    %1206 = vmatpush1.msra.mxu0 %v97
    %1207 = vmatprep.subr.mxu0 %v102
    %1208 = vmatpush1.msra.mxu0 %v101
    %1209 = vmatprep.subr.mxu0 %v106
    %1210 = vmatpush1.msra.mxu0 %v105
    %1211 = vmatprep.subr.mxu0 %v110
    %1212 = vmatpush1.msra.mxu0 %v109
    %1213 = vmatprep.subr.mxu0 %v114
    %1214 = vmatpush1.msra.mxu0 %v113
    %1215 = vmatprep.subr.mxu0 %v118
    %1216 = vmatpush1.msra.mxu0 %v117
    %1217 = vmatprep.subr.mxu0 %v122
    %1218 = vmatpush1.msra.mxu0 %v121
    %1219 = vmatprep.subr.mxu0 %v126
    %1220 = vmatpush1.msra.mxu0 %v125
    %1221 = vmatprep.subr.mxu0 %v130
    %1222 = vmatpush1.msra.mxu0 %v129
    %1223 = vmatprep.subr.mxu0 %v134
    %1224 = vmatpush1.msra.mxu0 %v133
    %1225 = vmatprep.subr.mxu0 %v138
    %1226 = vmatpush1.msra.mxu0 %v137
    %1227 = vmatprep.subr.mxu0 %v142
    %1228 = vmatpush1.msra.mxu0 %v141
    %1229 = vmatprep.subr.mxu0 %v146
    %1230 = vmatpush1.msra.mxu0 %v145
    %1231 = vmatprep.subr.mxu0 %v150
    %1232 = vmatpush1.msra.mxu0 %v149
    %1233 = vmatprep.subr.mxu0 0.0
    %1234 = vmatpush1.msra.mxu0 0.0
    %1235 = vmatprep.subr.mxu0 0.0
    %1236 = vmatpush1.msra.mxu0 0.0
    %1237 = vmatprep.subr.mxu0 0.0
    %1238 = vmatpush1.msra.mxu0 0.0
    %1239 = vmatprep.subr.mxu0 0.0
    %1240 = vmatpush1.msra.mxu0 0.0
    %1241 = vmatprep.subr.mxu0 0.0
    %1242 = vmatpush1.msra.mxu0 0.0
    %1243 = vmatprep.subr.mxu0 0.0
    %1244 = vmatpush1.msra.mxu0 0.0
    %1245 = vmatprep.subr.mxu0 0.0
    %1246 = vmatpush1.msra.mxu0 0.0
    %1247 = vmatprep.subr.mxu0 0.0
    %1248 = vmatpush1.msra.mxu0 0.0
    %1249 = vmatprep.subr.mxu0 0.0
    %1250 = vmatpush1.msra.mxu0 0.0
    %1251 = vmatprep.subr.mxu0 0.0
    %1252 = vmatpush1.msra.mxu0 0.0
    %1253 = vmatprep.subr.mxu0 0.0
    %1254 = vmatpush1.msra.mxu0 0.0
    %1255 = vmatprep.subr.mxu0 0.0
    %1256 = vmatpush1.msra.mxu0 0.0
    %1257 = vmatprep.subr.mxu0 0.0
    %1258 = vmatpush1.msra.mxu0 0.0
    %1259 = vmatprep.subr.mxu0 0.0
    %1260 = vmatpush1.msra.mxu0 0.0
    %1261 = vmatprep.subr.mxu0 0.0
    %1262 = vmatpush1.msra.mxu0 0.0
    %1263 = vmatprep.subr.mxu0 0.0
    %1264 = vmatpush1.msra.mxu0 0.0
    %1265 = vmatprep.mubr.f32.mxu0 0.0
    %1266 = vmatmul.mubr.f32.gmra.mrb[0].mxu0 %v1192
    %v1267 = vpop.f32.mrb[0].mxu0
    %v1268 = vadd.f32 %v1193, %v1267
    %v1269 = vpop.f32.mrb[0].mxu0
    %v1270 = vadd.f32 %v1194, %v1269
    %1271 = vdwg.mxu0
    %1272 = vmatprep.subr.mxu0 %v92
    %1273 = vmatpush1.msra.mxu0 %v91
    %1274 = vmatprep.subr.mxu0 %v96
    %1275 = vmatpush1.msra.mxu0 %v95
    %1276 = vmatprep.subr.mxu0 %v100
    %1277 = vmatpush1.msra.mxu0 %v99
    %1278 = vmatprep.subr.mxu0 %v104
    %1279 = vmatpush1.msra.mxu0 %v103
    %1280 = vmatprep.subr.mxu0 %v108
    %1281 = vmatpush1.msra.mxu0 %v107
    %1282 = vmatprep.subr.mxu0 %v112
    %1283 = vmatpush1.msra.mxu0 %v111
    %1284 = vmatprep.subr.mxu0 %v116
    %1285 = vmatpush1.msra.mxu0 %v115
    %1286 = vmatprep.subr.mxu0 %v120
    %1287 = vmatpush1.msra.mxu0 %v119
    %1288 = vmatprep.subr.mxu0 %v124
    %1289 = vmatpush1.msra.mxu0 %v123
    %1290 = vmatprep.subr.mxu0 %v128
    %1291 = vmatpush1.msra.mxu0 %v127
    %1292 = vmatprep.subr.mxu0 %v132
    %1293 = vmatpush1.msra.mxu0 %v131
    %1294 = vmatprep.subr.mxu0 %v136
    %1295 = vmatpush1.msra.mxu0 %v135
    %1296 = vmatprep.subr.mxu0 %v140
    %1297 = vmatpush1.msra.mxu0 %v139
    %1298 = vmatprep.subr.mxu0 %v144
    %1299 = vmatpush1.msra.mxu0 %v143
    %1300 = vmatprep.subr.mxu0 %v148
    %1301 = vmatpush1.msra.mxu0 %v147
    %1302 = vmatprep.subr.mxu0 %v152
    %1303 = vmatpush1.msra.mxu0 %v151
    %1304 = vmatprep.subr.mxu0 0.0
    %1305 = vmatpush1.msra.mxu0 0.0
    %1306 = vmatprep.subr.mxu0 0.0
    %1307 = vmatpush1.msra.mxu0 0.0
    %1308 = vmatprep.subr.mxu0 0.0
    %1309 = vmatpush1.msra.mxu0 0.0
    %1310 = vmatprep.subr.mxu0 0.0
    %1311 = vmatpush1.msra.mxu0 0.0
    %1312 = vmatprep.subr.mxu0 0.0
    %1313 = vmatpush1.msra.mxu0 0.0
    %1314 = vmatprep.subr.mxu0 0.0
    %1315 = vmatpush1.msra.mxu0 0.0
    %1316 = vmatprep.subr.mxu0 0.0
    %1317 = vmatpush1.msra.mxu0 0.0
    %1318 = vmatprep.subr.mxu0 0.0
    %1319 = vmatpush1.msra.mxu0 0.0
    %1320 = vmatprep.subr.mxu0 0.0
    %1321 = vmatpush1.msra.mxu0 0.0
    %1322 = vmatprep.subr.mxu0 0.0
    %1323 = vmatpush1.msra.mxu0 0.0
    %1324 = vmatprep.subr.mxu0 0.0
    %1325 = vmatpush1.msra.mxu0 0.0
    %1326 = vmatprep.subr.mxu0 0.0
    %1327 = vmatpush1.msra.mxu0 0.0
    %1328 = vmatprep.subr.mxu0 0.0
    %1329 = vmatpush1.msra.mxu0 0.0
    %1330 = vmatprep.subr.mxu0 0.0
    %1331 = vmatpush1.msra.mxu0 0.0
    %1332 = vmatprep.subr.mxu0 0.0
    %1333 = vmatpush1.msra.mxu0 0.0
    %1334 = vmatprep.subr.mxu0 0.0
    %1335 = vmatpush1.msra.mxu0 0.0
    %1336 = vmatprep.mubr.f32.mxu0 0.0
    %1337 = vmatmul.mubr.f32.gmra.mrb[0].mxu0 %v1192
    %v1338 = vpop.f32.mrb[0].mxu0
    %v1339 = vadd.f32 %v1195, %v1338
    %v1340 = vpop.f32.mrb[0].mxu0
    %v1341 = vadd.f32 %v1196, %v1340
    %1342 = vdwg.mxu0
    %v1343 = vxor.u32 %v1268, 2147483648
    %v1344 = vxor.u32 %v1270, 2147483648
    %v1345 = vmul.f32 %v1343, 1.442695
    %v1346 = vpow.pop %v1345
    %v1347 = vmul.f32 %v1344, 1.442695
    %v1348 = vpow.pop %v1347
    %v1349 = vadd.f32 %v1346, 1.0
    %v1350 = vadd.f32 %v1348, 1.0
    %v1351 = vrcp.pop %v1349
    %v1352 = vmul.f32 1.0, %v1351
    %v1353 = vrcp.pop %v1350
    %v1354 = vmul.f32 1.0, %v1353
    %v1355 = vtanh.pop %v1341
    %v1356 = vmul.f32 %v1354, %v1184
    %v1357 = vmul.f32 %v1352, %v1355
    %v1358 = vadd.f32 %v1356, %v1357
    %v1359 = vtanh.pop %v1358
    %v1360 = vxor.u32 %v1339, 2147483648
    %v1361 = vmul.f32 %v1360, 1.442695
    %v1362 = vpow.pop %v1361
    %v1363 = vadd.f32 %v1362, 1.0
    %v1364 = vrcp.pop %v1363
    %v1365 = vmul.f32 1.0, %v1364
    %v1366 = vmul.f32 %v1365, %v1359
    %v1367 = vrot.slane %v85, 7
    %v1368 = vrot.slane %v86, 7
    %v1369 = vrot.slane %v87, 7
    %v1370 = vrot.slane %v88, 7
    %1375 = vmatprep.subr.mxu0 %v90
    %1376 = vmatpush1.msra.mxu0 %v89
    %1377 = vmatprep.subr.mxu0 %v94
    %1378 = vmatpush1.msra.mxu0 %v93
    %1379 = vmatprep.subr.mxu0 %v98
    %1380 = vmatpush1.msra.mxu0 %v97
    %1381 = vmatprep.subr.mxu0 %v102
    %1382 = vmatpush1.msra.mxu0 %v101
    %1383 = vmatprep.subr.mxu0 %v106
    %1384 = vmatpush1.msra.mxu0 %v105
    %1385 = vmatprep.subr.mxu0 %v110
    %1386 = vmatpush1.msra.mxu0 %v109
    %1387 = vmatprep.subr.mxu0 %v114
    %1388 = vmatpush1.msra.mxu0 %v113
    %1389 = vmatprep.subr.mxu0 %v118
    %1390 = vmatpush1.msra.mxu0 %v117
    %1391 = vmatprep.subr.mxu0 %v122
    %1392 = vmatpush1.msra.mxu0 %v121
    %1393 = vmatprep.subr.mxu0 %v126
    %1394 = vmatpush1.msra.mxu0 %v125
    %1395 = vmatprep.subr.mxu0 %v130
    %1396 = vmatpush1.msra.mxu0 %v129
    %1397 = vmatprep.subr.mxu0 %v134
    %1398 = vmatpush1.msra.mxu0 %v133
    %1399 = vmatprep.subr.mxu0 %v138
    %1400 = vmatpush1.msra.mxu0 %v137
    %1401 = vmatprep.subr.mxu0 %v142
    %1402 = vmatpush1.msra.mxu0 %v141
    %1403 = vmatprep.subr.mxu0 %v146
    %1404 = vmatpush1.msra.mxu0 %v145
    %1405 = vmatprep.subr.mxu0 %v150
    %1406 = vmatpush1.msra.mxu0 %v149
    %1407 = vmatprep.subr.mxu0 0.0
    %1408 = vmatpush1.msra.mxu0 0.0
    %1409 = vmatprep.subr.mxu0 0.0
    %1410 = vmatpush1.msra.mxu0 0.0
    %1411 = vmatprep.subr.mxu0 0.0
    %1412 = vmatpush1.msra.mxu0 0.0
    %1413 = vmatprep.subr.mxu0 0.0
    %1414 = vmatpush1.msra.mxu0 0.0
    %1415 = vmatprep.subr.mxu0 0.0
    %1416 = vmatpush1.msra.mxu0 0.0
    %1417 = vmatprep.subr.mxu0 0.0
    %1418 = vmatpush1.msra.mxu0 0.0
    %1419 = vmatprep.subr.mxu0 0.0
    %1420 = vmatpush1.msra.mxu0 0.0
    %1421 = vmatprep.subr.mxu0 0.0
    %1422 = vmatpush1.msra.mxu0 0.0
    %1423 = vmatprep.subr.mxu0 0.0
    %1424 = vmatpush1.msra.mxu0 0.0
    %1425 = vmatprep.subr.mxu0 0.0
    %1426 = vmatpush1.msra.mxu0 0.0
    %1427 = vmatprep.subr.mxu0 0.0
    %1428 = vmatpush1.msra.mxu0 0.0
    %1429 = vmatprep.subr.mxu0 0.0
    %1430 = vmatpush1.msra.mxu0 0.0
    %1431 = vmatprep.subr.mxu0 0.0
    %1432 = vmatpush1.msra.mxu0 0.0
    %1433 = vmatprep.subr.mxu0 0.0
    %1434 = vmatpush1.msra.mxu0 0.0
    %1435 = vmatprep.subr.mxu0 0.0
    %1436 = vmatpush1.msra.mxu0 0.0
    %1437 = vmatprep.subr.mxu0 0.0
    %1438 = vmatpush1.msra.mxu0 0.0
    %1439 = vmatprep.mubr.f32.mxu0 0.0
    %1440 = vmatmul.mubr.f32.gmra.mrb[0].mxu0 %v1366
    %v1441 = vpop.f32.mrb[0].mxu0
    %v1442 = vadd.f32 %v1367, %v1441
    %v1443 = vpop.f32.mrb[0].mxu0
    %v1444 = vadd.f32 %v1368, %v1443
    %1445 = vdwg.mxu0
    %1446 = vmatprep.subr.mxu0 %v92
    %1447 = vmatpush1.msra.mxu0 %v91
    %1448 = vmatprep.subr.mxu0 %v96
    %1449 = vmatpush1.msra.mxu0 %v95
    %1450 = vmatprep.subr.mxu0 %v100
    %1451 = vmatpush1.msra.mxu0 %v99
    %1452 = vmatprep.subr.mxu0 %v104
    %1453 = vmatpush1.msra.mxu0 %v103
    %1454 = vmatprep.subr.mxu0 %v108
    %1455 = vmatpush1.msra.mxu0 %v107
    %1456 = vmatprep.subr.mxu0 %v112
    %1457 = vmatpush1.msra.mxu0 %v111
    %1458 = vmatprep.subr.mxu0 %v116
    %1459 = vmatpush1.msra.mxu0 %v115
    %1460 = vmatprep.subr.mxu0 %v120
    %1461 = vmatpush1.msra.mxu0 %v119
    %1462 = vmatprep.subr.mxu0 %v124
    %1463 = vmatpush1.msra.mxu0 %v123
    %1464 = vmatprep.subr.mxu0 %v128
    %1465 = vmatpush1.msra.mxu0 %v127
    %1466 = vmatprep.subr.mxu0 %v132
    %1467 = vmatpush1.msra.mxu0 %v131
    %1468 = vmatprep.subr.mxu0 %v136
    %1469 = vmatpush1.msra.mxu0 %v135
    %1470 = vmatprep.subr.mxu0 %v140
    %1471 = vmatpush1.msra.mxu0 %v139
    %1472 = vmatprep.subr.mxu0 %v144
    %1473 = vmatpush1.msra.mxu0 %v143
    %1474 = vmatprep.subr.mxu0 %v148
    %1475 = vmatpush1.msra.mxu0 %v147
    %1476 = vmatprep.subr.mxu0 %v152
    %1477 = vmatpush1.msra.mxu0 %v151
    %1478 = vmatprep.subr.mxu0 0.0
    %1479 = vmatpush1.msra.mxu0 0.0
    %1480 = vmatprep.subr.mxu0 0.0
    %1481 = vmatpush1.msra.mxu0 0.0
    %1482 = vmatprep.subr.mxu0 0.0
    %1483 = vmatpush1.msra.mxu0 0.0
    %1484 = vmatprep.subr.mxu0 0.0
    %1485 = vmatpush1.msra.mxu0 0.0
    %1486 = vmatprep.subr.mxu0 0.0
    %1487 = vmatpush1.msra.mxu0 0.0
    %1488 = vmatprep.subr.mxu0 0.0
    %1489 = vmatpush1.msra.mxu0 0.0
    %1490 = vmatprep.subr.mxu0 0.0
    %1491 = vmatpush1.msra.mxu0 0.0
    %1492 = vmatprep.subr.mxu0 0.0
    %1493 = vmatpush1.msra.mxu0 0.0
    %1494 = vmatprep.subr.mxu0 0.0
    %1495 = vmatpush1.msra.mxu0 0.0
    %1496 = vmatprep.subr.mxu0 0.0
    %1497 = vmatpush1.msra.mxu0 0.0
    %1498 = vmatprep.subr.mxu0 0.0
    %1499 = vmatpush1.msra.mxu0 0.0
    %1500 = vmatprep.subr.mxu0 0.0
    %1501 = vmatpush1.msra.mxu0 0.0
    %1502 = vmatprep.subr.mxu0 0.0
    %1503 = vmatpush1.msra.mxu0 0.0
    %1504 = vmatprep.subr.mxu0 0.0
    %1505 = vmatpush1.msra.mxu0 0.0
    %1506 = vmatprep.subr.mxu0 0.0
    %1507 = vmatpush1.msra.mxu0 0.0
    %1508 = vmatprep.subr.mxu0 0.0
    %1509 = vmatpush1.msra.mxu0 0.0
    %1510 = vmatprep.mubr.f32.mxu0 0.0
    %1511 = vmatmul.mubr.f32.gmra.mrb[0].mxu0 %v1366
    %v1512 = vpop.f32.mrb[0].mxu0
    %v1513 = vadd.f32 %v1369, %v1512
    %v1514 = vpop.f32.mrb[0].mxu0
    %v1515 = vadd.f32 %v1370, %v1514
    %1516 = vdwg.mxu0
    %v1517 = vxor.u32 %v1442, 2147483648
    %v1518 = vxor.u32 %v1444, 2147483648
    %v1519 = vmul.f32 %v1517, 1.442695
    %v1520 = vpow.pop %v1519
    %v1521 = vmul.f32 %v1518, 1.442695
    %v1522 = vpow.pop %v1521
    %v1523 = vadd.f32 %v1520, 1.0
    %v1524 = vadd.f32 %v1522, 1.0
    %v1525 = vrcp.pop %v1523
    %v1526 = vmul.f32 1.0, %v1525
    %v1527 = vrcp.pop %v1524
    %v1528 = vmul.f32 1.0, %v1527
    %v1529 = vtanh.pop %v1515
    %v1530 = vmul.f32 %v1528, %v1358
    %v1531 = vmul.f32 %v1526, %v1529
    %v1532 = vadd.f32 %v1530, %v1531
    %v1533 = vtanh.pop %v1532
    %v1534 = vxor.u32 %v1513, 2147483648
    %v1535 = vmul.f32 %v1534, 1.442695
    %v1536 = vpow.pop %v1535
    %v1537 = vadd.f32 %v1536, 1.0
    %v1538 = vrcp.pop %v1537
    %v1539 = vmul.f32 1.0, %v1538
    %v1540 = vmul.f32 %v1539, %v1533
    %v1541 = vmul.f32 %v1540, %v31
    %vm1542 = vcmask 1040384
    %v1543 = vsel %vm1542, %v1541, 0.0
    %1544 = vadd.xlane.f32.xlu0 %v1543
    %v1545 = vpop.xlane.xlu0 %1544
    %v1546 = vadd.f32 %v1545, %v32
    %vm1547 = vcmask 0
    %1548 = vst.msk [vmem:[#allocation5] sm:$0x1] %vm1547, %v1546
    // Predicated region
    $region18: #{receipt_lstm_forward.1} parent=1 // pred_check
      _
    $region19: #{receipt_lstm_forward.1} parent=1 // pred_check_branch
      %1550 = sbr.rel (0) target = $region21
    $region20: #{receipt_lstm_forward.1} parent=1 // pred_region
      %s1552 = ssub.s32 16, 16
      %1553 = vsyncadd [#allocation4], %s1552
      %s1555 = sshll.u32 [#allocation5], 4
      %s1556 = int_to_ptr.vmem [resolvable:$true] %s1555
      %1558 = dma.vmem_to_hbm [thread:$0]  %s1556, 16, %s3, [#allocation4]
    $region21: #{receipt_lstm_forward.1} parent=1 // pred_fallthru
      _
    // Predicated region
    $region22: #{receipt_lstm_forward.1} parent=1 // pred_check
      _
    $region23: #{receipt_lstm_forward.1} parent=1 // pred_check_branch
      %1560 = sbr.rel (0) target = $region25
    $region24: #{receipt_lstm_forward.1} parent=1 // pred_region
      %1561 = dma.done [#allocation4], 16
    $region25: #{receipt_lstm_forward.1} parent=1 // pred_fallthru
      _
    %1562 = vsyncpa [#allocation3], 1
    %1563 = vsyncpa [#allocation4], 1

</llo_original>
